<compile_context>
chip_gen: v5e
topology: v5e:2x2
jax: 0.10.0
libtpu: 0.0.40
codegen_flags: <defaults>
</compile_context>

<pallas_src>
import functools

import jax
import jax.numpy as jnp
from jax import lax
from jax.experimental import pallas as pl
from jax.experimental.pallas import tpu as pltpu


# -----------------------------------------------------------------------------
# Pallas kernel: fused bidirectional LSTM recurrence over one time chunk.
#
# Grid = (num_chunks,), sequential ("arbitrary") — the recurrence forces serial
# time.  Each grid step receives the pre-computed input-projection gates for a
# forward chunk c and a backward chunk (nc-1-c), runs Tc recurrent steps for
# each direction (only the (B,H)x(H,4H) MXU matmul + gate math remains in the
# loop), and writes (Tc, B, H) output blocks per direction.
# -----------------------------------------------------------------------------
def _bilstm_chunk_kernel(gxf_ref, gxb_ref, whhf_ref, whhr_ref,
                         outf_ref, outb_ref,
                         hf_sc, cf_sc, hb_sc, cb_sc):
    """gxf/gxb: (Tc,B,4H) f32 pre-activations (x@W_ih + b) for fwd / bwd chunk.
    whhf/whhr: (H,4H) recurrent weights in the MXU compute dtype (bf16).
    outf/outb: (Tc,B,H) hidden outputs.  h*/c* scratch: (B,H) f32 carries."""
    @pl.when(pl.program_id(0) == 0)
    def _init():
        hf_sc[...] = jnp.zeros_like(hf_sc)
        cf_sc[...] = jnp.zeros_like(cf_sc)
        hb_sc[...] = jnp.zeros_like(hb_sc)
        cb_sc[...] = jnp.zeros_like(cb_sc)

    tc = gxf_ref.shape[0]
    H = hf_sc.shape[-1]
    cdt = whhf_ref.dtype   # MXU compute dtype (bf16); gate math stays f32.

    def lstm_cell(gates, c_prev):
        # PyTorch gate order (i, f, g, o).  These slices are free views when
        # H % 128 == 0; at the tiny test H they cost a negligible relayout.
        i_g = jax.nn.sigmoid(gates[:, 0 * H:1 * H])
        f_g = jax.nn.sigmoid(gates[:, 1 * H:2 * H])
        g_g = jnp.tanh(gates[:, 2 * H:3 * H])
        o_g = jax.nn.sigmoid(gates[:, 3 * H:4 * H])
        c_new = f_g * c_prev + i_g * g_g
        h_new = o_g * jnp.tanh(c_new)
        return h_new, c_new

    # Fully-unrolled inner loop over the small static time chunk (equivalent
    # to lax.fori_loop(..., unroll=True) but with static indices).
    for i in range(tc):
        # -- forward direction: local time i  (global time c*Tc + i) --------
        gf = gxf_ref[i] + jnp.dot(hf_sc[...].astype(cdt), whhf_ref[...],
                                  preferred_element_type=jnp.float32)
        h_f, c_f = lstm_cell(gf, cf_sc[...])
        hf_sc[...] = h_f
        cf_sc[...] = c_f
        outf_ref[i] = h_f.astype(outf_ref.dtype)

        # -- backward direction: local time Tc-1-i inside the reversed chunk
        #    (global time (nc-1-c)*Tc + Tc-1-i) -----------------------------
        j = tc - 1 - i
        gb = gxb_ref[j] + jnp.dot(hb_sc[...].astype(cdt), whhr_ref[...],
                                  preferred_element_type=jnp.float32)
        h_b, c_b = lstm_cell(gb, cb_sc[...])
        hb_sc[...] = h_b
        cb_sc[...] = c_b
        outb_ref[j] = h_b.astype(outb_ref.dtype)


def _largest_divisor_leq(n, cap):
    for d in range(min(n, cap), 0, -1):
        if n % d == 0:
            return d
    return 1


def _bilstm_recurrence(gx_f, gx_b, whh_f, whh_r, *, out_dtype, time_chunk=16):
    """Fused bidirectional recurrence.

    gx_f / gx_b: (T, B, 4H) f32 hoisted input projections (bias folded in).
    whh_f / whh_r: (H, 4H) recurrent weights (already in compute dtype).
    Returns (out_fwd, out_bwd), each (T, B, H) in out_dtype.
    """
    T, B, G = gx_f.shape
    H = whh_f.shape[0]
    assert G == 4 * H
    tc = _largest_divisor_leq(T, time_chunk)
    nc = T // tc

    fwd_map = lambda c: (c, 0, 0)
    bwd_map = lambda c: (nc - 1 - c, 0, 0)

    # TODO(synk): for production shapes on v7x (64 MiB VMEM) also set
    # vmem_limit_bytes and single-buffer the grid-invariant W_hh inputs.
    out_f, out_b = pl.pallas_call(
        _bilstm_chunk_kernel,
        out_shape=(jax.ShapeDtypeStruct((T, B, H), out_dtype),
                   jax.ShapeDtypeStruct((T, B, H), out_dtype)),
        grid=(nc,),
        in_specs=[
            pl.BlockSpec((tc, B, 4 * H), fwd_map),          # fwd gates chunk
            pl.BlockSpec((tc, B, 4 * H), bwd_map),          # bwd gates chunk
            pl.BlockSpec((H, 4 * H), lambda c: (0, 0)),     # W_hh fwd
            pl.BlockSpec((H, 4 * H), lambda c: (0, 0)),     # W_hh bwd
        ],
        out_specs=(
            pl.BlockSpec((tc, B, H), fwd_map),
            pl.BlockSpec((tc, B, H), bwd_map),
        ),
        scratch_shapes=[
            pltpu.VMEM((B, H), jnp.float32),   # h fwd
            pltpu.VMEM((B, H), jnp.float32),   # c fwd
            pltpu.VMEM((B, H), jnp.float32),   # h bwd
            pltpu.VMEM((B, H), jnp.float32),   # c bwd
        ],
        compiler_params=pltpu.CompilerParams(
            dimension_semantics=("arbitrary",)),
    )(gx_f, gx_b, whh_f, whh_r)
    return out_f, out_b


def _input_projection(hiddens, w_ih, bias, *, compute_dtype):
    """gx = concat(hiddens, -1) @ w_ih + bias, WITHOUT materializing the
    concat: w_ih is row-sliced per source tensor and the partial (T*B, d_k) x
    (d_k, 4H) matmuls are accumulated in f32.  Returns (T, B, 4H) f32."""
    T, B = hiddens[0].shape[:2]
    acc = bias.astype(jnp.float32)                # (1, 4H), broadcasts
    off = 0
    for h in hiddens:
        d = h.shape[-1]
        w_blk = lax.slice_in_dim(w_ih, off, off + d, axis=0)
        acc = acc + jnp.dot(h.reshape(T * B, d).astype(compute_dtype),
                            w_blk.astype(compute_dtype),
                            preferred_element_type=jnp.float32)
        off += d
    return acc.reshape(T, B, w_ih.shape[1])


def multi_level_rnn_encoder(x, x_mask, params, *,
                            compute_dtype=jnp.bfloat16, time_chunk=16):
    """Forward pass matching MultiLevelRNNEncoder.forward (drop_prob == 0).

    x: (batch, seq, input_size).  Returns a list of (batch, seq, 2*hidden)
    arrays, one per layer (== hiddens[1:] of the PyTorch module).
    """
    del x_mask  # unused by the reference forward pass (no packing)
    x_tbd = jnp.transpose(x, (1, 0, 2))          # (seq, batch, feat)
    hiddens = [x_tbd]
    outputs = []
    for p in params:
        # TODO(synk): F.dropout on rnn_input skipped (drop_prob == 0 / eval).
        gx_f = _input_projection(hiddens, p["wih_f"], p["b_f"],
                                 compute_dtype=compute_dtype)
        gx_b = _input_projection(hiddens, p["wih_r"], p["b_r"],
                                 compute_dtype=compute_dtype)
        out_f, out_b = _bilstm_recurrence(
            gx_f, gx_b,
            p["whh_f"].astype(compute_dtype),
            p["whh_r"].astype(compute_dtype),
            out_dtype=x.dtype, time_chunk=time_chunk)
        rnn_output = jnp.concatenate([out_f, out_b], axis=-1)   # (T, B, 2H)
        hiddens.append(rnn_output)
        outputs.append(jnp.transpose(rnn_output, (1, 0, 2)))
    return outputs


# -----------------------------------------------------------------------------
# Deterministic parameter construction (PyTorch-style U(-1/sqrt(H), 1/sqrt(H)))
# -----------------------------------------------------------------------------
def init_params(key, input_size, hidden_size, num_layers):
    params = []
    bound = 1.0 / (hidden_size ** 0.5)
    for i in range(num_layers):
        d_in = input_size + 2 * hidden_size * i
        layer = {}
        for direction in ("f", "r"):
            key, k1, k2, k3, k4 = jax.random.split(key, 5)
            w_ih = jax.random.uniform(
                k1, (d_in, 4 * hidden_size), jnp.float32, -bound, bound)
            w_hh = jax.random.uniform(
                k2, (hidden_size, 4 * hidden_size), jnp.float32, -bound, bound)
            b_ih = jax.random.uniform(
                k3, (4 * hidden_size,), jnp.float32, -bound, bound)
            b_hh = jax.random.uniform(
                k4, (4 * hidden_size,), jnp.float32, -bound, bound)
            layer["wih_" + direction] = w_ih
            layer["whh_" + direction] = w_hh
            layer["b_" + direction] = (b_ih + b_hh).reshape(1, 4 * hidden_size)
        params.append(layer)
    return params


# -----------------------------------------------------------------------------
# Pure-JAX f32 reference (lax.scan) for correctness checking
# -----------------------------------------------------------------------------
def _ref_lstm_direction(x, w_ih, w_hh, bias, reverse):
    T, B, D = x.shape
    H = w_hh.shape[0]
    xs = x[::-1] if reverse else x

    def step(carry, x_t):
        h, c = carry
        gates = x_t @ w_ih + h @ w_hh + bias
        i = jax.nn.sigmoid(gates[:, 0 * H:1 * H])
        f = jax.nn.sigmoid(gates[:, 1 * H:2 * H])
        g = jnp.tanh(gates[:, 2 * H:3 * H])
        o = jax.nn.sigmoid(gates[:, 3 * H:4 * H])
        c = f * c + i * g
        h = o * jnp.tanh(c)
        return (h, c), h

    init = (jnp.zeros((B, H), jnp.float32), jnp.zeros((B, H), jnp.float32))
    _, hs = jax.lax.scan(step, init, xs)
    return hs[::-1] if reverse else hs


def _ref_encoder(x, params):
    x_tbd = jnp.transpose(x, (1, 0, 2))
    hiddens = [x_tbd]
    outputs = []
    for p in params:
        rnn_input = jnp.concatenate(hiddens, axis=2)
        hf = _ref_lstm_direction(rnn_input, p["wih_f"], p["whh_f"], p["b_f"], False)
        hb = _ref_lstm_direction(rnn_input, p["wih_r"], p["whh_r"], p["b_r"], True)
        out = jnp.concatenate([hf, hb], axis=-1)
        hiddens.append(out)
        outputs.append(jnp.transpose(out, (1, 0, 2)))
    return outputs


if __name__ == "__main__":
    batch, seq, input_size, hidden_size, num_layers = 2, 8, 16, 32, 2

    key = jax.random.PRNGKey(0)
    key, kx = jax.random.split(key)
    x = jax.random.normal(kx, (batch, seq, input_size), jnp.float32)
    x_mask = jnp.zeros((batch, seq), jnp.bool_)   # unused, kept for API parity

    params = init_params(key, input_size, hidden_size, num_layers)

    run = jax.jit(multi_level_rnn_encoder)
    outs = run(x, x_mask, params)
    outs = [jax.block_until_ready(o) for o in outs]

    # sanity: shapes + numerics vs pure-JAX f32 reference.  Tolerance is
    # relaxed to account for the bf16 MXU matmuls (f32 accumulation).
    refs = _ref_encoder(x, params)
    assert len(outs) == num_layers
    for o, r in zip(outs, refs):
        assert o.shape == (batch, seq, 2 * hidden_size)
        err = float(jnp.max(jnp.abs(o - r)))
        assert err < 2e-2, f"max abs err {err}"

    print("KERNEL_OK")
</pallas_src>

<mosaic_0001>
module attributes {stable_mosaic.version = 11 : i64} {
  func.func @_bilstm_chunk_kernel(%arg0: i32, %arg1: memref<8x2x128xf32, #tpu.memory_space<vmem>>, %arg2: memref<8x2x128xf32, #tpu.memory_space<vmem>>, %arg3: memref<32x128xbf16, #tpu.memory_space<vmem>>, %arg4: memref<32x128xbf16, #tpu.memory_space<vmem>>, %arg5: memref<8x2x32xf32, #tpu.memory_space<vmem>>, %arg6: memref<8x2x32xf32, #tpu.memory_space<vmem>>, %arg7: memref<2x32xf32, #tpu.memory_space<vmem>>, %arg8: memref<2x32xf32, #tpu.memory_space<vmem>>, %arg9: memref<2x32xf32, #tpu.memory_space<vmem>>, %arg10: memref<2x32xf32, #tpu.memory_space<vmem>>) attributes {dimension_semantics = [#tpu.dimension_semantics<arbitrary>], iteration_bounds = array<i64: 1>, scalar_prefetch = 0 : i64, scratch_operands = 4 : i64, tpu.core_type = #tpu.core_type<tc>, window_params = [{transform_indices = @transform_0, window_bounds = array<i64: 8, 2, 128>}, {transform_indices = @transform_1, window_bounds = array<i64: 8, 2, 128>}, {pipeline_mode = #tpu.pipeline_mode<synchronous>, transform_indices = @transform_2, window_bounds = array<i64: 32, 128>}, {pipeline_mode = #tpu.pipeline_mode<synchronous>, transform_indices = @transform_3, window_bounds = array<i64: 32, 128>}, {transform_indices = @transform_4, window_bounds = array<i64: 8, 2, 32>}, {transform_indices = @transform_5, window_bounds = array<i64: 8, 2, 32>}]} {
    %c0_i32 = arith.constant 0 : i32
    %0 = arith.cmpi eq, %arg0, %c0_i32 : i32
    %1 = arith.extui %0 : i1 to i32
    %c0_i32_0 = arith.constant 0 : i32
    %2 = arith.cmpi ne, %1, %c0_i32_0 : i32
    scf.if %2 {
      %cst_312 = arith.constant 0.000000e+00 : f32
      %611 = vector.broadcast %cst_312 : f32 to vector<2x32xf32>
      %c0_313 = arith.constant 0 : index
      %c0_314 = arith.constant 0 : index
      %612 = vector.load %arg7[%c0_313, %c0_314] : memref<2x32xf32, #tpu.memory_space<vmem>>, vector<2x32xf32>
      tpu.vector_store %arg7[%c0_313, %c0_314], %611 {strides = array<i32>} : memref<2x32xf32, #tpu.memory_space<vmem>>, vector<2x32xf32>,
      %cst_315 = arith.constant 0.000000e+00 : f32
      %613 = vector.broadcast %cst_315 : f32 to vector<2x32xf32>
      %c0_316 = arith.constant 0 : index
      %c0_317 = arith.constant 0 : index
      %614 = vector.load %arg8[%c0_316, %c0_317] : memref<2x32xf32, #tpu.memory_space<vmem>>, vector<2x32xf32>
      tpu.vector_store %arg8[%c0_316, %c0_317], %613 {strides = array<i32>} : memref<2x32xf32, #tpu.memory_space<vmem>>, vector<2x32xf32>,
      %cst_318 = arith.constant 0.000000e+00 : f32
      %615 = vector.broadcast %cst_318 : f32 to vector<2x32xf32>
      %c0_319 = arith.constant 0 : index
      %c0_320 = arith.constant 0 : index
      %616 = vector.load %arg9[%c0_319, %c0_320] : memref<2x32xf32, #tpu.memory_space<vmem>>, vector<2x32xf32>
      tpu.vector_store %arg9[%c0_319, %c0_320], %615 {strides = array<i32>} : memref<2x32xf32, #tpu.memory_space<vmem>>, vector<2x32xf32>,
      %cst_321 = arith.constant 0.000000e+00 : f32
      %617 = vector.broadcast %cst_321 : f32 to vector<2x32xf32>
      %c0_322 = arith.constant 0 : index
      %c0_323 = arith.constant 0 : index
      %618 = vector.load %arg10[%c0_322, %c0_323] : memref<2x32xf32, #tpu.memory_space<vmem>>, vector<2x32xf32>
      tpu.vector_store %arg10[%c0_322, %c0_323], %617 {strides = array<i32>} : memref<2x32xf32, #tpu.memory_space<vmem>>, vector<2x32xf32>,
    } else {
    }
    %c0 = arith.constant 0 : index
    %c0_1 = arith.constant 0 : index
    %c0_2 = arith.constant 0 : index
    %3 = vector.load %arg1[%c0, %c0_1, %c0_2] : memref<8x2x128xf32, #tpu.memory_space<vmem>>, vector<1x2x128xf32>
    %4 = vector.shape_cast %3 : vector<1x2x128xf32> to vector<2x128xf32>
    %c0_3 = arith.constant 0 : index
    %c0_4 = arith.constant 0 : index
    %5 = vector.load %arg7[%c0_3, %c0_4] : memref<2x32xf32, #tpu.memory_space<vmem>>, vector<2x32xf32>
    %6 = arith.truncf %5 : vector<2x32xf32> to vector<2x32xbf16>
    %c0_5 = arith.constant 0 : index
    %c0_6 = arith.constant 0 : index
    %7 = vector.load %arg3[%c0_5, %c0_6] : memref<32x128xbf16, #tpu.memory_space<vmem>>, vector<32x128xbf16>
    %cst = arith.constant dense<0.000000e+00> : vector<2x128xf32>
    %8 = tpu.matmul %6, %7, %cst {dimension_numbers = #tpu.dot_dimension_numbers<[1], [0], [0], [1], [0, 0, 1, 1], [], []>} : vector<2x32xbf16>, vector<32x128xbf16>, vector<2x128xf32> -> vector<2x128xf32>
    %9 = arith.addf %4, %8 : vector<2x128xf32>
    %c0_7 = arith.constant 0 : index
    %c0_8 = arith.constant 0 : index
    %10 = vector.load %arg8[%c0_7, %c0_8] : memref<2x32xf32, #tpu.memory_space<vmem>>, vector<2x32xf32>
    %11 = vector.extract_strided_slice %9 {offsets = [0, 0], sizes = [2, 32], strides = [1, 1]} : vector<2x128xf32> to vector<2x32xf32>
    %12 = arith.negf %11 : vector<2x32xf32>
    %13 = math.exp %12 : vector<2x32xf32>
    %cst_9 = arith.constant 1.000000e+00 : f32
    %14 = vector.broadcast %cst_9 : f32 to vector<2x32xf32>
    %15 = arith.addf %14, %13 : vector<2x32xf32>
    %16 = arith.divf %14, %15 : vector<2x32xf32>
    %17 = vector.extract_strided_slice %9 {offsets = [0, 32], sizes = [2, 32], strides = [1, 1]} : vector<2x128xf32> to vector<2x32xf32>
    %18 = arith.negf %17 : vector<2x32xf32>
    %19 = math.exp %18 : vector<2x32xf32>
    %cst_10 = arith.constant 1.000000e+00 : f32
    %20 = vector.broadcast %cst_10 : f32 to vector<2x32xf32>
    %21 = arith.addf %20, %19 : vector<2x32xf32>
    %22 = arith.divf %20, %21 : vector<2x32xf32>
    %23 = vector.extract_strided_slice %9 {offsets = [0, 64], sizes = [2, 32], strides = [1, 1]} : vector<2x128xf32> to vector<2x32xf32>
    %24 = math.tanh %23 : vector<2x32xf32>
    %25 = vector.extract_strided_slice %9 {offsets = [0, 96], sizes = [2, 32], strides = [1, 1]} : vector<2x128xf32> to vector<2x32xf32>
    %26 = arith.negf %25 : vector<2x32xf32>
    %27 = math.exp %26 : vector<2x32xf32>
    %cst_11 = arith.constant 1.000000e+00 : f32
    %28 = vector.broadcast %cst_11 : f32 to vector<2x32xf32>
    %29 = arith.addf %28, %27 : vector<2x32xf32>
    %30 = arith.divf %28, %29 : vector<2x32xf32>
    %31 = arith.mulf %22, %10 : vector<2x32xf32>
    %32 = arith.mulf %16, %24 : vector<2x32xf32>
    %33 = arith.addf %31, %32 : vector<2x32xf32>
    %34 = math.tanh %33 : vector<2x32xf32>
    %35 = arith.mulf %30, %34 : vector<2x32xf32>
    %c0_12 = arith.constant 0 : index
    %c0_13 = arith.constant 0 : index
    %36 = vector.load %arg7[%c0_12, %c0_13] : memref<2x32xf32, #tpu.memory_space<vmem>>, vector<2x32xf32>
    tpu.vector_store %arg7[%c0_12, %c0_13], %35 {strides = array<i32>} : memref<2x32xf32, #tpu.memory_space<vmem>>, vector<2x32xf32>,
    %c0_14 = arith.constant 0 : index
    %c0_15 = arith.constant 0 : index
    %37 = vector.load %arg8[%c0_14, %c0_15] : memref<2x32xf32, #tpu.memory_space<vmem>>, vector<2x32xf32>
    tpu.vector_store %arg8[%c0_14, %c0_15], %33 {strides = array<i32>} : memref<2x32xf32, #tpu.memory_space<vmem>>, vector<2x32xf32>,
    %c0_16 = arith.constant 0 : index
    %c0_17 = arith.constant 0 : index
    %c0_18 = arith.constant 0 : index
    %38 = vector.load %arg5[%c0_16, %c0_17, %c0_18] : memref<8x2x32xf32, #tpu.memory_space<vmem>>, vector<1x2x32xf32>
    %39 = vector.shape_cast %38 : vector<1x2x32xf32> to vector<2x32xf32>
    %40 = vector.shape_cast %35 : vector<2x32xf32> to vector<1x2x32xf32>
    tpu.vector_store %arg5[%c0_16, %c0_17, %c0_18], %40 {strides = array<i32>} : memref<8x2x32xf32, #tpu.memory_space<vmem>>, vector<1x2x32xf32>,
    %c7 = arith.constant 7 : index
    %c0_19 = arith.constant 0 : index
    %c0_20 = arith.constant 0 : index
    %41 = vector.load %arg2[%c7, %c0_19, %c0_20] : memref<8x2x128xf32, #tpu.memory_space<vmem>>, vector<1x2x128xf32>
    %42 = vector.shape_cast %41 : vector<1x2x128xf32> to vector<2x128xf32>
    %c0_21 = arith.constant 0 : index
    %c0_22 = arith.constant 0 : index
    %43 = vector.load %arg9[%c0_21, %c0_22] : memref<2x32xf32, #tpu.memory_space<vmem>>, vector<2x32xf32>
    %44 = arith.truncf %43 : vector<2x32xf32> to vector<2x32xbf16>
    %c0_23 = arith.constant 0 : index
    %c0_24 = arith.constant 0 : index
    %45 = vector.load %arg4[%c0_23, %c0_24] : memref<32x128xbf16, #tpu.memory_space<vmem>>, vector<32x128xbf16>
    %cst_25 = arith.constant dense<0.000000e+00> : vector<2x128xf32>
    %46 = tpu.matmul %44, %45, %cst_25 {dimension_numbers = #tpu.dot_dimension_numbers<[1], [0], [0], [1], [0, 0, 1, 1], [], []>} : vector<2x32xbf16>, vector<32x128xbf16>, vector<2x128xf32> -> vector<2x128xf32>
    %47 = arith.addf %42, %46 : vector<2x128xf32>
    %c0_26 = arith.constant 0 : index
    %c0_27 = arith.constant 0 : index
    %48 = vector.load %arg10[%c0_26, %c0_27] : memref<2x32xf32, #tpu.memory_space<vmem>>, vector<2x32xf32>
    %49 = vector.extract_strided_slice %47 {offsets = [0, 0], sizes = [2, 32], strides = [1, 1]} : vector<2x128xf32> to vector<2x32xf32>
    %50 = arith.negf %49 : vector<2x32xf32>
    %51 = math.exp %50 : vector<2x32xf32>
    %cst_28 = arith.constant 1.000000e+00 : f32
    %52 = vector.broadcast %cst_28 : f32 to vector<2x32xf32>
    %53 = arith.addf %52, %51 : vector<2x32xf32>
    %54 = arith.divf %52, %53 : vector<2x32xf32>
    %55 = vector.extract_strided_slice %47 {offsets = [0, 32], sizes = [2, 32], strides = [1, 1]} : vector<2x128xf32> to vector<2x32xf32>
    %56 = arith.negf %55 : vector<2x32xf32>
    %57 = math.exp %56 : vector<2x32xf32>
    %cst_29 = arith.constant 1.000000e+00 : f32
    %58 = vector.broadcast %cst_29 : f32 to vector<2x32xf32>
    %59 = arith.addf %58, %57 : vector<2x32xf32>
    %60 = arith.divf %58, %59 : vector<2x32xf32>
    %61 = vector.extract_strided_slice %47 {offsets = [0, 64], sizes = [2, 32], strides = [1, 1]} : vector<2x128xf32> to vector<2x32xf32>
    %62 = math.tanh %61 : vector<2x32xf32>
    %63 = vector.extract_strided_slice %47 {offsets = [0, 96], sizes = [2, 32], strides = [1, 1]} : vector<2x128xf32> to vector<2x32xf32>
    %64 = arith.negf %63 : vector<2x32xf32>
    %65 = math.exp %64 : vector<2x32xf32>
    %cst_30 = arith.constant 1.000000e+00 : f32
    %66 = vector.broadcast %cst_30 : f32 to vector<2x32xf32>
    %67 = arith.addf %66, %65 : vector<2x32xf32>
    %68 = arith.divf %66, %67 : vector<2x32xf32>
    %69 = arith.mulf %60, %48 : vector<2x32xf32>
    %70 = arith.mulf %54, %62 : vector<2x32xf32>
    %71 = arith.addf %69, %70 : vector<2x32xf32>
    %72 = math.tanh %71 : vector<2x32xf32>
    %73 = arith.mulf %68, %72 : vector<2x32xf32>
    %c0_31 = arith.constant 0 : index
    %c0_32 = arith.constant 0 : index
    %74 = vector.load %arg9[%c0_31, %c0_32] : memref<2x32xf32, #tpu.memory_space<vmem>>, vector<2x32xf32>
    tpu.vector_store %arg9[%c0_31, %c0_32], %73 {strides = array<i32>} : memref<2x32xf32, #tpu.memory_space<vmem>>, vector<2x32xf32>,
    %c0_33 = arith.constant 0 : index
    %c0_34 = arith.constant 0 : index
    %75 = vector.load %arg10[%c0_33, %c0_34] : memref<2x32xf32, #tpu.memory_space<vmem>>, vector<2x32xf32>
    tpu.vector_store %arg10[%c0_33, %c0_34], %71 {strides = array<i32>} : memref<2x32xf32, #tpu.memory_space<vmem>>, vector<2x32xf32>,
    %c7_35 = arith.constant 7 : index
    %c0_36 = arith.constant 0 : index
    %c0_37 = arith.constant 0 : index
    %76 = vector.load %arg6[%c7_35, %c0_36, %c0_37] : memref<8x2x32xf32, #tpu.memory_space<vmem>>, vector<1x2x32xf32>
    %77 = vector.shape_cast %76 : vector<1x2x32xf32> to vector<2x32xf32>
    %78 = vector.shape_cast %73 : vector<2x32xf32> to vector<1x2x32xf32>
    tpu.vector_store %arg6[%c7_35, %c0_36, %c0_37], %78 {strides = array<i32>} : memref<8x2x32xf32, #tpu.memory_space<vmem>>, vector<1x2x32xf32>,
    %c1 = arith.constant 1 : index
    %c0_38 = arith.constant 0 : index
    %c0_39 = arith.constant 0 : index
    %79 = vector.load %arg1[%c1, %c0_38, %c0_39] : memref<8x2x128xf32, #tpu.memory_space<vmem>>, vector<1x2x128xf32>
    %80 = vector.shape_cast %79 : vector<1x2x128xf32> to vector<2x128xf32>
    %c0_40 = arith.constant 0 : index
    %c0_41 = arith.constant 0 : index
    %81 = vector.load %arg7[%c0_40, %c0_41] : memref<2x32xf32, #tpu.memory_space<vmem>>, vector<2x32xf32>
    %82 = arith.truncf %81 : vector<2x32xf32> to vector<2x32xbf16>
    %c0_42 = arith.constant 0 : index
    %c0_43 = arith.constant 0 : index
    %83 = vector.load %arg3[%c0_42, %c0_43] : memref<32x128xbf16, #tpu.memory_space<vmem>>, vector<32x128xbf16>
    %cst_44 = arith.constant dense<0.000000e+00> : vector<2x128xf32>
    %84 = tpu.matmul %82, %83, %cst_44 {dimension_numbers = #tpu.dot_dimension_numbers<[1], [0], [0], [1], [0, 0, 1, 1], [], []>} : vector<2x32xbf16>, vector<32x128xbf16>, vector<2x128xf32> -> vector<2x128xf32>
    %85 = arith.addf %80, %84 : vector<2x128xf32>
    %c0_45 = arith.constant 0 : index
    %c0_46 = arith.constant 0 : index
    %86 = vector.load %arg8[%c0_45, %c0_46] : memref<2x32xf32, #tpu.memory_space<vmem>>, vector<2x32xf32>
    %87 = vector.extract_strided_slice %85 {offsets = [0, 0], sizes = [2, 32], strides = [1, 1]} : vector<2x128xf32> to vector<2x32xf32>
    %88 = arith.negf %87 : vector<2x32xf32>
    %89 = math.exp %88 : vector<2x32xf32>
    %cst_47 = arith.constant 1.000000e+00 : f32
    %90 = vector.broadcast %cst_47 : f32 to vector<2x32xf32>
    %91 = arith.addf %90, %89 : vector<2x32xf32>
    %92 = arith.divf %90, %91 : vector<2x32xf32>
    %93 = vector.extract_strided_slice %85 {offsets = [0, 32], sizes = [2, 32], strides = [1, 1]} : vector<2x128xf32> to vector<2x32xf32>
    %94 = arith.negf %93 : vector<2x32xf32>
    %95 = math.exp %94 : vector<2x32xf32>
    %cst_48 = arith.constant 1.000000e+00 : f32
    %96 = vector.broadcast %cst_48 : f32 to vector<2x32xf32>
    %97 = arith.addf %96, %95 : vector<2x32xf32>
    %98 = arith.divf %96, %97 : vector<2x32xf32>
    %99 = vector.extract_strided_slice %85 {offsets = [0, 64], sizes = [2, 32], strides = [1, 1]} : vector<2x128xf32> to vector<2x32xf32>
    %100 = math.tanh %99 : vector<2x32xf32>
    %101 = vector.extract_strided_slice %85 {offsets = [0, 96], sizes = [2, 32], strides = [1, 1]} : vector<2x128xf32> to vector<2x32xf32>
    %102 = arith.negf %101 : vector<2x32xf32>
    %103 = math.exp %102 : vector<2x32xf32>
    %cst_49 = arith.constant 1.000000e+00 : f32
    %104 = vector.broadcast %cst_49 : f32 to vector<2x32xf32>
    %105 = arith.addf %104, %103 : vector<2x32xf32>
    %106 = arith.divf %104, %105 : vector<2x32xf32>
    %107 = arith.mulf %98, %86 : vector<2x32xf32>
    %108 = arith.mulf %92, %100 : vector<2x32xf32>
    %109 = arith.addf %107, %108 : vector<2x32xf32>
    %110 = math.tanh %109 : vector<2x32xf32>
    %111 = arith.mulf %106, %110 : vector<2x32xf32>
    %c0_50 = arith.constant 0 : index
    %c0_51 = arith.constant 0 : index
    %112 = vector.load %arg7[%c0_50, %c0_51] : memref<2x32xf32, #tpu.memory_space<vmem>>, vector<2x32xf32>
    tpu.vector_store %arg7[%c0_50, %c0_51], %111 {strides = array<i32>} : memref<2x32xf32, #tpu.memory_space<vmem>>, vector<2x32xf32>,
    %c0_52 = arith.constant 0 : index
    %c0_53 = arith.constant 0 : index
    %113 = vector.load %arg8[%c0_52, %c0_53] : memref<2x32xf32, #tpu.memory_space<vmem>>, vector<2x32xf32>
    tpu.vector_store %arg8[%c0_52, %c0_53], %109 {strides = array<i32>} : memref<2x32xf32, #tpu.memory_space<vmem>>, vector<2x32xf32>,
    %c1_54 = arith.constant 1 : index
    %c0_55 = arith.constant 0 : index
    %c0_56 = arith.constant 0 : index
    %114 = vector.load %arg5[%c1_54, %c0_55, %c0_56] : memref<8x2x32xf32, #tpu.memory_space<vmem>>, vector<1x2x32xf32>
    %115 = vector.shape_cast %114 : vector<1x2x32xf32> to vector<2x32xf32>
    %116 = vector.shape_cast %111 : vector<2x32xf32> to vector<1x2x32xf32>
    tpu.vector_store %arg5[%c1_54, %c0_55, %c0_56], %116 {strides = array<i32>} : memref<8x2x32xf32, #tpu.memory_space<vmem>>, vector<1x2x32xf32>,
    %c6 = arith.constant 6 : index
    %c0_57 = arith.constant 0 : index
    %c0_58 = arith.constant 0 : index
    %117 = vector.load %arg2[%c6, %c0_57, %c0_58] : memref<8x2x128xf32, #tpu.memory_space<vmem>>, vector<1x2x128xf32>
    %118 = vector.shape_cast %117 : vector<1x2x128xf32> to vector<2x128xf32>
    %c0_59 = arith.constant 0 : index
    %c0_60 = arith.constant 0 : index
    %119 = vector.load %arg9[%c0_59, %c0_60] : memref<2x32xf32, #tpu.memory_space<vmem>>, vector<2x32xf32>
    %120 = arith.truncf %119 : vector<2x32xf32> to vector<2x32xbf16>
    %c0_61 = arith.constant 0 : index
    %c0_62 = arith.constant 0 : index
    %121 = vector.load %arg4[%c0_61, %c0_62] : memref<32x128xbf16, #tpu.memory_space<vmem>>, vector<32x128xbf16>
    %cst_63 = arith.constant dense<0.000000e+00> : vector<2x128xf32>
    %122 = tpu.matmul %120, %121, %cst_63 {dimension_numbers = #tpu.dot_dimension_numbers<[1], [0], [0], [1], [0, 0, 1, 1], [], []>} : vector<2x32xbf16>, vector<32x128xbf16>, vector<2x128xf32> -> vector<2x128xf32>
    %123 = arith.addf %118, %122 : vector<2x128xf32>
    %c0_64 = arith.constant 0 : index
    %c0_65 = arith.constant 0 : index
    %124 = vector.load %arg10[%c0_64, %c0_65] : memref<2x32xf32, #tpu.memory_space<vmem>>, vector<2x32xf32>
    %125 = vector.extract_strided_slice %123 {offsets = [0, 0], sizes = [2, 32], strides = [1, 1]} : vector<2x128xf32> to vector<2x32xf32>
    %126 = arith.negf %125 : vector<2x32xf32>
    %127 = math.exp %126 : vector<2x32xf32>
    %cst_66 = arith.constant 1.000000e+00 : f32
    %128 = vector.broadcast %cst_66 : f32 to vector<2x32xf32>
    %129 = arith.addf %128, %127 : vector<2x32xf32>
    %130 = arith.divf %128, %129 : vector<2x32xf32>
    %131 = vector.extract_strided_slice %123 {offsets = [0, 32], sizes = [2, 32], strides = [1, 1]} : vector<2x128xf32> to vector<2x32xf32>
    %132 = arith.negf %131 : vector<2x32xf32>
    %133 = math.exp %132 : vector<2x32xf32>
    %cst_67 = arith.constant 1.000000e+00 : f32
    %134 = vector.broadcast %cst_67 : f32 to vector<2x32xf32>
    %135 = arith.addf %134, %133 : vector<2x32xf32>
    %136 = arith.divf %134, %135 : vector<2x32xf32>
    %137 = vector.extract_strided_slice %123 {offsets = [0, 64], sizes = [2, 32], strides = [1, 1]} : vector<2x128xf32> to vector<2x32xf32>
    %138 = math.tanh %137 : vector<2x32xf32>
    %139 = vector.extract_strided_slice %123 {offsets = [0, 96], sizes = [2, 32], strides = [1, 1]} : vector<2x128xf32> to vector<2x32xf32>
    %140 = arith.negf %139 : vector<2x32xf32>
    %141 = math.exp %140 : vector<2x32xf32>
    %cst_68 = arith.constant 1.000000e+00 : f32
    %142 = vector.broadcast %cst_68 : f32 to vector<2x32xf32>
    %143 = arith.addf %142, %141 : vector<2x32xf32>
    %144 = arith.divf %142, %143 : vector<2x32xf32>
    %145 = arith.mulf %136, %124 : vector<2x32xf32>
    %146 = arith.mulf %130, %138 : vector<2x32xf32>
    %147 = arith.addf %145, %146 : vector<2x32xf32>
    %148 = math.tanh %147 : vector<2x32xf32>
    %149 = arith.mulf %144, %148 : vector<2x32xf32>
    %c0_69 = arith.constant 0 : index
    %c0_70 = arith.constant 0 : index
    %150 = vector.load %arg9[%c0_69, %c0_70] : memref<2x32xf32, #tpu.memory_space<vmem>>, vector<2x32xf32>
    tpu.vector_store %arg9[%c0_69, %c0_70], %149 {strides = array<i32>} : memref<2x32xf32, #tpu.memory_space<vmem>>, vector<2x32xf32>,
    %c0_71 = arith.constant 0 : index
    %c0_72 = arith.constant 0 : index
    %151 = vector.load %arg10[%c0_71, %c0_72] : memref<2x32xf32, #tpu.memory_space<vmem>>, vector<2x32xf32>
    tpu.vector_store %arg10[%c0_71, %c0_72], %147 {strides = array<i32>} : memref<2x32xf32, #tpu.memory_space<vmem>>, vector<2x32xf32>,
    %c6_73 = arith.constant 6 : index
    %c0_74 = arith.constant 0 : index
    %c0_75 = arith.constant 0 : index
    %152 = vector.load %arg6[%c6_73, %c0_74, %c0_75] : memref<8x2x32xf32, #tpu.memory_space<vmem>>, vector<1x2x32xf32>
    %153 = vector.shape_cast %152 : vector<1x2x32xf32> to vector<2x32xf32>
    %154 = vector.shape_cast %149 : vector<2x32xf32> to vector<1x2x32xf32>
    tpu.vector_store %arg6[%c6_73, %c0_74, %c0_75], %154 {strides = array<i32>} : memref<8x2x32xf32, #tpu.memory_space<vmem>>, vector<1x2x32xf32>,
    %c2 = arith.constant 2 : index
    %c0_76 = arith.constant 0 : index
    %c0_77 = arith.constant 0 : index
    %155 = vector.load %arg1[%c2, %c0_76, %c0_77] : memref<8x2x128xf32, #tpu.memory_space<vmem>>, vector<1x2x128xf32>
    %156 = vector.shape_cast %155 : vector<1x2x128xf32> to vector<2x128xf32>
    %c0_78 = arith.constant 0 : index
    %c0_79 = arith.constant 0 : index
    %157 = vector.load %arg7[%c0_78, %c0_79] : memref<2x32xf32, #tpu.memory_space<vmem>>, vector<2x32xf32>
    %158 = arith.truncf %157 : vector<2x32xf32> to vector<2x32xbf16>
    %c0_80 = arith.constant 0 : index
    %c0_81 = arith.constant 0 : index
    %159 = vector.load %arg3[%c0_80, %c0_81] : memref<32x128xbf16, #tpu.memory_space<vmem>>, vector<32x128xbf16>
    %cst_82 = arith.constant dense<0.000000e+00> : vector<2x128xf32>
    %160 = tpu.matmul %158, %159, %cst_82 {dimension_numbers = #tpu.dot_dimension_numbers<[1], [0], [0], [1], [0, 0, 1, 1], [], []>} : vector<2x32xbf16>, vector<32x128xbf16>, vector<2x128xf32> -> vector<2x128xf32>
    %161 = arith.addf %156, %160 : vector<2x128xf32>
    %c0_83 = arith.constant 0 : index
    %c0_84 = arith.constant 0 : index
    %162 = vector.load %arg8[%c0_83, %c0_84] : memref<2x32xf32, #tpu.memory_space<vmem>>, vector<2x32xf32>
    %163 = vector.extract_strided_slice %161 {offsets = [0, 0], sizes = [2, 32], strides = [1, 1]} : vector<2x128xf32> to vector<2x32xf32>
    %164 = arith.negf %163 : vector<2x32xf32>
    %165 = math.exp %164 : vector<2x32xf32>
    %cst_85 = arith.constant 1.000000e+00 : f32
    %166 = vector.broadcast %cst_85 : f32 to vector<2x32xf32>
    %167 = arith.addf %166, %165 : vector<2x32xf32>
    %168 = arith.divf %166, %167 : vector<2x32xf32>
    %169 = vector.extract_strided_slice %161 {offsets = [0, 32], sizes = [2, 32], strides = [1, 1]} : vector<2x128xf32> to vector<2x32xf32>
    %170 = arith.negf %169 : vector<2x32xf32>
    %171 = math.exp %170 : vector<2x32xf32>
    %cst_86 = arith.constant 1.000000e+00 : f32
    %172 = vector.broadcast %cst_86 : f32 to vector<2x32xf32>
    %173 = arith.addf %172, %171 : vector<2x32xf32>
    %174 = arith.divf %172, %173 : vector<2x32xf32>
    %175 = vector.extract_strided_slice %161 {offsets = [0, 64], sizes = [2, 32], strides = [1, 1]} : vector<2x128xf32> to vector<2x32xf32>
    %176 = math.tanh %175 : vector<2x32xf32>
    %177 = vector.extract_strided_slice %161 {offsets = [0, 96], sizes = [2, 32], strides = [1, 1]} : vector<2x128xf32> to vector<2x32xf32>
    %178 = arith.negf %177 : vector<2x32xf32>
    %179 = math.exp %178 : vector<2x32xf32>
    %cst_87 = arith.constant 1.000000e+00 : f32
    %180 = vector.broadcast %cst_87 : f32 to vector<2x32xf32>
    %181 = arith.addf %180, %179 : vector<2x32xf32>
    %182 = arith.divf %180, %181 : vector<2x32xf32>
    %183 = arith.mulf %174, %162 : vector<2x32xf32>
    %184 = arith.mulf %168, %176 : vector<2x32xf32>
    %185 = arith.addf %183, %184 : vector<2x32xf32>
    %186 = math.tanh %185 : vector<2x32xf32>
    %187 = arith.mulf %182, %186 : vector<2x32xf32>
    %c0_88 = arith.constant 0 : index
    %c0_89 = arith.constant 0 : index
    %188 = vector.load %arg7[%c0_88, %c0_89] : memref<2x32xf32, #tpu.memory_space<vmem>>, vector<2x32xf32>
    tpu.vector_store %arg7[%c0_88, %c0_89], %187 {strides = array<i32>} : memref<2x32xf32, #tpu.memory_space<vmem>>, vector<2x32xf32>,
    %c0_90 = arith.constant 0 : index
    %c0_91 = arith.constant 0 : index
    %189 = vector.load %arg8[%c0_90, %c0_91] : memref<2x32xf32, #tpu.memory_space<vmem>>, vector<2x32xf32>
    tpu.vector_store %arg8[%c0_90, %c0_91], %185 {strides = array<i32>} : memref<2x32xf32, #tpu.memory_space<vmem>>, vector<2x32xf32>,
    %c2_92 = arith.constant 2 : index
    %c0_93 = arith.constant 0 : index
    %c0_94 = arith.constant 0 : index
    %190 = vector.load %arg5[%c2_92, %c0_93, %c0_94] : memref<8x2x32xf32, #tpu.memory_space<vmem>>, vector<1x2x32xf32>
    %191 = vector.shape_cast %190 : vector<1x2x32xf32> to vector<2x32xf32>
    %192 = vector.shape_cast %187 : vector<2x32xf32> to vector<1x2x32xf32>
    tpu.vector_store %arg5[%c2_92, %c0_93, %c0_94], %192 {strides = array<i32>} : memref<8x2x32xf32, #tpu.memory_space<vmem>>, vector<1x2x32xf32>,
    %c5 = arith.constant 5 : index
    %c0_95 = arith.constant 0 : index
    %c0_96 = arith.constant 0 : index
    %193 = vector.load %arg2[%c5, %c0_95, %c0_96] : memref<8x2x128xf32, #tpu.memory_space<vmem>>, vector<1x2x128xf32>
    %194 = vector.shape_cast %193 : vector<1x2x128xf32> to vector<2x128xf32>
    %c0_97 = arith.constant 0 : index
    %c0_98 = arith.constant 0 : index
    %195 = vector.load %arg9[%c0_97, %c0_98] : memref<2x32xf32, #tpu.memory_space<vmem>>, vector<2x32xf32>
    %196 = arith.truncf %195 : vector<2x32xf32> to vector<2x32xbf16>
    %c0_99 = arith.constant 0 : index
    %c0_100 = arith.constant 0 : index
    %197 = vector.load %arg4[%c0_99, %c0_100] : memref<32x128xbf16, #tpu.memory_space<vmem>>, vector<32x128xbf16>
    %cst_101 = arith.constant dense<0.000000e+00> : vector<2x128xf32>
    %198 = tpu.matmul %196, %197, %cst_101 {dimension_numbers = #tpu.dot_dimension_numbers<[1], [0], [0], [1], [0, 0, 1, 1], [], []>} : vector<2x32xbf16>, vector<32x128xbf16>, vector<2x128xf32> -> vector<2x128xf32>
    %199 = arith.addf %194, %198 : vector<2x128xf32>
    %c0_102 = arith.constant 0 : index
    %c0_103 = arith.constant 0 : index
    %200 = vector.load %arg10[%c0_102, %c0_103] : memref<2x32xf32, #tpu.memory_space<vmem>>, vector<2x32xf32>
    %201 = vector.extract_strided_slice %199 {offsets = [0, 0], sizes = [2, 32], strides = [1, 1]} : vector<2x128xf32> to vector<2x32xf32>
    %202 = arith.negf %201 : vector<2x32xf32>
    %203 = math.exp %202 : vector<2x32xf32>
    %cst_104 = arith.constant 1.000000e+00 : f32
    %204 = vector.broadcast %cst_104 : f32 to vector<2x32xf32>
    %205 = arith.addf %204, %203 : vector<2x32xf32>
    %206 = arith.divf %204, %205 : vector<2x32xf32>
    %207 = vector.extract_strided_slice %199 {offsets = [0, 32], sizes = [2, 32], strides = [1, 1]} : vector<2x128xf32> to vector<2x32xf32>
    %208 = arith.negf %207 : vector<2x32xf32>
    %209 = math.exp %208 : vector<2x32xf32>
    %cst_105 = arith.constant 1.000000e+00 : f32
    %210 = vector.broadcast %cst_105 : f32 to vector<2x32xf32>
    %211 = arith.addf %210, %209 : vector<2x32xf32>
    %212 = arith.divf %210, %211 : vector<2x32xf32>
    %213 = vector.extract_strided_slice %199 {offsets = [0, 64], sizes = [2, 32], strides = [1, 1]} : vector<2x128xf32> to vector<2x32xf32>
    %214 = math.tanh %213 : vector<2x32xf32>
    %215 = vector.extract_strided_slice %199 {offsets = [0, 96], sizes = [2, 32], strides = [1, 1]} : vector<2x128xf32> to vector<2x32xf32>
    %216 = arith.negf %215 : vector<2x32xf32>
    %217 = math.exp %216 : vector<2x32xf32>
    %cst_106 = arith.constant 1.000000e+00 : f32
    %218 = vector.broadcast %cst_106 : f32 to vector<2x32xf32>
    %219 = arith.addf %218, %217 : vector<2x32xf32>
    %220 = arith.divf %218, %219 : vector<2x32xf32>
    %221 = arith.mulf %212, %200 : vector<2x32xf32>
    %222 = arith.mulf %206, %214 : vector<2x32xf32>
    %223 = arith.addf %221, %222 : vector<2x32xf32>
    %224 = math.tanh %223 : vector<2x32xf32>
    %225 = arith.mulf %220, %224 : vector<2x32xf32>
    %c0_107 = arith.constant 0 : index
    %c0_108 = arith.constant 0 : index
    %226 = vector.load %arg9[%c0_107, %c0_108] : memref<2x32xf32, #tpu.memory_space<vmem>>, vector<2x32xf32>
    tpu.vector_store %arg9[%c0_107, %c0_108], %225 {strides = array<i32>} : memref<2x32xf32, #tpu.memory_space<vmem>>, vector<2x32xf32>,
    %c0_109 = arith.constant 0 : index
    %c0_110 = arith.constant 0 : index
    %227 = vector.load %arg10[%c0_109, %c0_110] : memref<2x32xf32, #tpu.memory_space<vmem>>, vector<2x32xf32>
    tpu.vector_store %arg10[%c0_109, %c0_110], %223 {strides = array<i32>} : memref<2x32xf32, #tpu.memory_space<vmem>>, vector<2x32xf32>,
    %c5_111 = arith.constant 5 : index
    %c0_112 = arith.constant 0 : index
    %c0_113 = arith.constant 0 : index
    %228 = vector.load %arg6[%c5_111, %c0_112, %c0_113] : memref<8x2x32xf32, #tpu.memory_space<vmem>>, vector<1x2x32xf32>
    %229 = vector.shape_cast %228 : vector<1x2x32xf32> to vector<2x32xf32>
    %230 = vector.shape_cast %225 : vector<2x32xf32> to vector<1x2x32xf32>
    tpu.vector_store %arg6[%c5_111, %c0_112, %c0_113], %230 {strides = array<i32>} : memref<8x2x32xf32, #tpu.memory_space<vmem>>, vector<1x2x32xf32>,
    %c3 = arith.constant 3 : index
    %c0_114 = arith.constant 0 : index
    %c0_115 = arith.constant 0 : index
    %231 = vector.load %arg1[%c3, %c0_114, %c0_115] : memref<8x2x128xf32, #tpu.memory_space<vmem>>, vector<1x2x128xf32>
    %232 = vector.shape_cast %231 : vector<1x2x128xf32> to vector<2x128xf32>
    %c0_116 = arith.constant 0 : index
    %c0_117 = arith.constant 0 : index
    %233 = vector.load %arg7[%c0_116, %c0_117] : memref<2x32xf32, #tpu.memory_space<vmem>>, vector<2x32xf32>
    %234 = arith.truncf %233 : vector<2x32xf32> to vector<2x32xbf16>
    %c0_118 = arith.constant 0 : index
    %c0_119 = arith.constant 0 : index
    %235 = vector.load %arg3[%c0_118, %c0_119] : memref<32x128xbf16, #tpu.memory_space<vmem>>, vector<32x128xbf16>
    %cst_120 = arith.constant dense<0.000000e+00> : vector<2x128xf32>
    %236 = tpu.matmul %234, %235, %cst_120 {dimension_numbers = #tpu.dot_dimension_numbers<[1], [0], [0], [1], [0, 0, 1, 1], [], []>} : vector<2x32xbf16>, vector<32x128xbf16>, vector<2x128xf32> -> vector<2x128xf32>
    %237 = arith.addf %232, %236 : vector<2x128xf32>
    %c0_121 = arith.constant 0 : index
    %c0_122 = arith.constant 0 : index
    %238 = vector.load %arg8[%c0_121, %c0_122] : memref<2x32xf32, #tpu.memory_space<vmem>>, vector<2x32xf32>
    %239 = vector.extract_strided_slice %237 {offsets = [0, 0], sizes = [2, 32], strides = [1, 1]} : vector<2x128xf32> to vector<2x32xf32>
    %240 = arith.negf %239 : vector<2x32xf32>
    %241 = math.exp %240 : vector<2x32xf32>
    %cst_123 = arith.constant 1.000000e+00 : f32
    %242 = vector.broadcast %cst_123 : f32 to vector<2x32xf32>
    %243 = arith.addf %242, %241 : vector<2x32xf32>
    %244 = arith.divf %242, %243 : vector<2x32xf32>
    %245 = vector.extract_strided_slice %237 {offsets = [0, 32], sizes = [2, 32], strides = [1, 1]} : vector<2x128xf32> to vector<2x32xf32>
    %246 = arith.negf %245 : vector<2x32xf32>
    %247 = math.exp %246 : vector<2x32xf32>
    %cst_124 = arith.constant 1.000000e+00 : f32
    %248 = vector.broadcast %cst_124 : f32 to vector<2x32xf32>
    %249 = arith.addf %248, %247 : vector<2x32xf32>
    %250 = arith.divf %248, %249 : vector<2x32xf32>
    %251 = vector.extract_strided_slice %237 {offsets = [0, 64], sizes = [2, 32], strides = [1, 1]} : vector<2x128xf32> to vector<2x32xf32>
    %252 = math.tanh %251 : vector<2x32xf32>
    %253 = vector.extract_strided_slice %237 {offsets = [0, 96], sizes = [2, 32], strides = [1, 1]} : vector<2x128xf32> to vector<2x32xf32>
    %254 = arith.negf %253 : vector<2x32xf32>
    %255 = math.exp %254 : vector<2x32xf32>
    %cst_125 = arith.constant 1.000000e+00 : f32
    %256 = vector.broadcast %cst_125 : f32 to vector<2x32xf32>
    %257 = arith.addf %256, %255 : vector<2x32xf32>
    %258 = arith.divf %256, %257 : vector<2x32xf32>
    %259 = arith.mulf %250, %238 : vector<2x32xf32>
    %260 = arith.mulf %244, %252 : vector<2x32xf32>
    %261 = arith.addf %259, %260 : vector<2x32xf32>
    %262 = math.tanh %261 : vector<2x32xf32>
    %263 = arith.mulf %258, %262 : vector<2x32xf32>
    %c0_126 = arith.constant 0 : index
    %c0_127 = arith.constant 0 : index
    %264 = vector.load %arg7[%c0_126, %c0_127] : memref<2x32xf32, #tpu.memory_space<vmem>>, vector<2x32xf32>
    tpu.vector_store %arg7[%c0_126, %c0_127], %263 {strides = array<i32>} : memref<2x32xf32, #tpu.memory_space<vmem>>, vector<2x32xf32>,
    %c0_128 = arith.constant 0 : index
    %c0_129 = arith.constant 0 : index
    %265 = vector.load %arg8[%c0_128, %c0_129] : memref<2x32xf32, #tpu.memory_space<vmem>>, vector<2x32xf32>
    tpu.vector_store %arg8[%c0_128, %c0_129], %261 {strides = array<i32>} : memref<2x32xf32, #tpu.memory_space<vmem>>, vector<2x32xf32>,
    %c3_130 = arith.constant 3 : index
    %c0_131 = arith.constant 0 : index
    %c0_132 = arith.constant 0 : index
    %266 = vector.load %arg5[%c3_130, %c0_131, %c0_132] : memref<8x2x32xf32, #tpu.memory_space<vmem>>, vector<1x2x32xf32>
    %267 = vector.shape_cast %266 : vector<1x2x32xf32> to vector<2x32xf32>
    %268 = vector.shape_cast %263 : vector<2x32xf32> to vector<1x2x32xf32>
    tpu.vector_store %arg5[%c3_130, %c0_131, %c0_132], %268 {strides = array<i32>} : memref<8x2x32xf32, #tpu.memory_space<vmem>>, vector<1x2x32xf32>,
    %c4 = arith.constant 4 : index
    %c0_133 = arith.constant 0 : index
    %c0_134 = arith.constant 0 : index
    %269 = vector.load %arg2[%c4, %c0_133, %c0_134] : memref<8x2x128xf32, #tpu.memory_space<vmem>>, vector<1x2x128xf32>
    %270 = vector.shape_cast %269 : vector<1x2x128xf32> to vector<2x128xf32>
    %c0_135 = arith.constant 0 : index
    %c0_136 = arith.constant 0 : index
    %271 = vector.load %arg9[%c0_135, %c0_136] : memref<2x32xf32, #tpu.memory_space<vmem>>, vector<2x32xf32>
    %272 = arith.truncf %271 : vector<2x32xf32> to vector<2x32xbf16>
    %c0_137 = arith.constant 0 : index
    %c0_138 = arith.constant 0 : index
    %273 = vector.load %arg4[%c0_137, %c0_138] : memref<32x128xbf16, #tpu.memory_space<vmem>>, vector<32x128xbf16>
    %cst_139 = arith.constant dense<0.000000e+00> : vector<2x128xf32>
    %274 = tpu.matmul %272, %273, %cst_139 {dimension_numbers = #tpu.dot_dimension_numbers<[1], [0], [0], [1], [0, 0, 1, 1], [], []>} : vector<2x32xbf16>, vector<32x128xbf16>, vector<2x128xf32> -> vector<2x128xf32>
    %275 = arith.addf %270, %274 : vector<2x128xf32>
    %c0_140 = arith.constant 0 : index
    %c0_141 = arith.constant 0 : index
    %276 = vector.load %arg10[%c0_140, %c0_141] : memref<2x32xf32, #tpu.memory_space<vmem>>, vector<2x32xf32>
    %277 = vector.extract_strided_slice %275 {offsets = [0, 0], sizes = [2, 32], strides = [1, 1]} : vector<2x128xf32> to vector<2x32xf32>
    %278 = arith.negf %277 : vector<2x32xf32>
    %279 = math.exp %278 : vector<2x32xf32>
    %cst_142 = arith.constant 1.000000e+00 : f32
    %280 = vector.broadcast %cst_142 : f32 to vector<2x32xf32>
    %281 = arith.addf %280, %279 : vector<2x32xf32>
    %282 = arith.divf %280, %281 : vector<2x32xf32>
    %283 = vector.extract_strided_slice %275 {offsets = [0, 32], sizes = [2, 32], strides = [1, 1]} : vector<2x128xf32> to vector<2x32xf32>
    %284 = arith.negf %283 : vector<2x32xf32>
    %285 = math.exp %284 : vector<2x32xf32>
    %cst_143 = arith.constant 1.000000e+00 : f32
    %286 = vector.broadcast %cst_143 : f32 to vector<2x32xf32>
    %287 = arith.addf %286, %285 : vector<2x32xf32>
    %288 = arith.divf %286, %287 : vector<2x32xf32>
    %289 = vector.extract_strided_slice %275 {offsets = [0, 64], sizes = [2, 32], strides = [1, 1]} : vector<2x128xf32> to vector<2x32xf32>
    %290 = math.tanh %289 : vector<2x32xf32>
    %291 = vector.extract_strided_slice %275 {offsets = [0, 96], sizes = [2, 32], strides = [1, 1]} : vector<2x128xf32> to vector<2x32xf32>
    %292 = arith.negf %291 : vector<2x32xf32>
    %293 = math.exp %292 : vector<2x32xf32>
    %cst_144 = arith.constant 1.000000e+00 : f32
    %294 = vector.broadcast %cst_144 : f32 to vector<2x32xf32>
    %295 = arith.addf %294, %293 : vector<2x32xf32>
    %296 = arith.divf %294, %295 : vector<2x32xf32>
    %297 = arith.mulf %288, %276 : vector<2x32xf32>
    %298 = arith.mulf %282, %290 : vector<2x32xf32>
    %299 = arith.addf %297, %298 : vector<2x32xf32>
    %300 = math.tanh %299 : vector<2x32xf32>
    %301 = arith.mulf %296, %300 : vector<2x32xf32>
    %c0_145 = arith.constant 0 : index
    %c0_146 = arith.constant 0 : index
    %302 = vector.load %arg9[%c0_145, %c0_146] : memref<2x32xf32, #tpu.memory_space<vmem>>, vector<2x32xf32>
    tpu.vector_store %arg9[%c0_145, %c0_146], %301 {strides = array<i32>} : memref<2x32xf32, #tpu.memory_space<vmem>>, vector<2x32xf32>,
    %c0_147 = arith.constant 0 : index
    %c0_148 = arith.constant 0 : index
    %303 = vector.load %arg10[%c0_147, %c0_148] : memref<2x32xf32, #tpu.memory_space<vmem>>, vector<2x32xf32>
    tpu.vector_store %arg10[%c0_147, %c0_148], %299 {strides = array<i32>} : memref<2x32xf32, #tpu.memory_space<vmem>>, vector<2x32xf32>,
    %c4_149 = arith.constant 4 : index
    %c0_150 = arith.constant 0 : index
    %c0_151 = arith.constant 0 : index
    %304 = vector.load %arg6[%c4_149, %c0_150, %c0_151] : memref<8x2x32xf32, #tpu.memory_space<vmem>>, vector<1x2x32xf32>
    %305 = vector.shape_cast %304 : vector<1x2x32xf32> to vector<2x32xf32>
    %306 = vector.shape_cast %301 : vector<2x32xf32> to vector<1x2x32xf32>
    tpu.vector_store %arg6[%c4_149, %c0_150, %c0_151], %306 {strides = array<i32>} : memref<8x2x32xf32, #tpu.memory_space<vmem>>, vector<1x2x32xf32>,
    %c4_152 = arith.constant 4 : index
    %c0_153 = arith.constant 0 : index
    %c0_154 = arith.constant 0 : index
    %307 = vector.load %arg1[%c4_152, %c0_153, %c0_154] : memref<8x2x128xf32, #tpu.memory_space<vmem>>, vector<1x2x128xf32>
    %308 = vector.shape_cast %307 : vector<1x2x128xf32> to vector<2x128xf32>
    %c0_155 = arith.constant 0 : index
    %c0_156 = arith.constant 0 : index
    %309 = vector.load %arg7[%c0_155, %c0_156] : memref<2x32xf32, #tpu.memory_space<vmem>>, vector<2x32xf32>
    %310 = arith.truncf %309 : vector<2x32xf32> to vector<2x32xbf16>
    %c0_157 = arith.constant 0 : index
    %c0_158 = arith.constant 0 : index
    %311 = vector.load %arg3[%c0_157, %c0_158] : memref<32x128xbf16, #tpu.memory_space<vmem>>, vector<32x128xbf16>
    %cst_159 = arith.constant dense<0.000000e+00> : vector<2x128xf32>
    %312 = tpu.matmul %310, %311, %cst_159 {dimension_numbers = #tpu.dot_dimension_numbers<[1], [0], [0], [1], [0, 0, 1, 1], [], []>} : vector<2x32xbf16>, vector<32x128xbf16>, vector<2x128xf32> -> vector<2x128xf32>
    %313 = arith.addf %308, %312 : vector<2x128xf32>
    %c0_160 = arith.constant 0 : index
    %c0_161 = arith.constant 0 : index
    %314 = vector.load %arg8[%c0_160, %c0_161] : memref<2x32xf32, #tpu.memory_space<vmem>>, vector<2x32xf32>
    %315 = vector.extract_strided_slice %313 {offsets = [0, 0], sizes = [2, 32], strides = [1, 1]} : vector<2x128xf32> to vector<2x32xf32>
    %316 = arith.negf %315 : vector<2x32xf32>
    %317 = math.exp %316 : vector<2x32xf32>
    %cst_162 = arith.constant 1.000000e+00 : f32
    %318 = vector.broadcast %cst_162 : f32 to vector<2x32xf32>
    %319 = arith.addf %318, %317 : vector<2x32xf32>
    %320 = arith.divf %318, %319 : vector<2x32xf32>
    %321 = vector.extract_strided_slice %313 {offsets = [0, 32], sizes = [2, 32], strides = [1, 1]} : vector<2x128xf32> to vector<2x32xf32>
    %322 = arith.negf %321 : vector<2x32xf32>
    %323 = math.exp %322 : vector<2x32xf32>
    %cst_163 = arith.constant 1.000000e+00 : f32
    %324 = vector.broadcast %cst_163 : f32 to vector<2x32xf32>
    %325 = arith.addf %324, %323 : vector<2x32xf32>
    %326 = arith.divf %324, %325 : vector<2x32xf32>
    %327 = vector.extract_strided_slice %313 {offsets = [0, 64], sizes = [2, 32], strides = [1, 1]} : vector<2x128xf32> to vector<2x32xf32>
    %328 = math.tanh %327 : vector<2x32xf32>
    %329 = vector.extract_strided_slice %313 {offsets = [0, 96], sizes = [2, 32], strides = [1, 1]} : vector<2x128xf32> to vector<2x32xf32>
    %330 = arith.negf %329 : vector<2x32xf32>
    %331 = math.exp %330 : vector<2x32xf32>
    %cst_164 = arith.constant 1.000000e+00 : f32
    %332 = vector.broadcast %cst_164 : f32 to vector<2x32xf32>
    %333 = arith.addf %332, %331 : vector<2x32xf32>
    %334 = arith.divf %332, %333 : vector<2x32xf32>
    %335 = arith.mulf %326, %314 : vector<2x32xf32>
    %336 = arith.mulf %320, %328 : vector<2x32xf32>
    %337 = arith.addf %335, %336 : vector<2x32xf32>
    %338 = math.tanh %337 : vector<2x32xf32>
    %339 = arith.mulf %334, %338 : vector<2x32xf32>
    %c0_165 = arith.constant 0 : index
    %c0_166 = arith.constant 0 : index
    %340 = vector.load %arg7[%c0_165, %c0_166] : memref<2x32xf32, #tpu.memory_space<vmem>>, vector<2x32xf32>
    tpu.vector_store %arg7[%c0_165, %c0_166], %339 {strides = array<i32>} : memref<2x32xf32, #tpu.memory_space<vmem>>, vector<2x32xf32>,
    %c0_167 = arith.constant 0 : index
    %c0_168 = arith.constant 0 : index
    %341 = vector.load %arg8[%c0_167, %c0_168] : memref<2x32xf32, #tpu.memory_space<vmem>>, vector<2x32xf32>
    tpu.vector_store %arg8[%c0_167, %c0_168], %337 {strides = array<i32>} : memref<2x32xf32, #tpu.memory_space<vmem>>, vector<2x32xf32>,
    %c4_169 = arith.constant 4 : index
    %c0_170 = arith.constant 0 : index
    %c0_171 = arith.constant 0 : index
    %342 = vector.load %arg5[%c4_169, %c0_170, %c0_171] : memref<8x2x32xf32, #tpu.memory_space<vmem>>, vector<1x2x32xf32>
    %343 = vector.shape_cast %342 : vector<1x2x32xf32> to vector<2x32xf32>
    %344 = vector.shape_cast %339 : vector<2x32xf32> to vector<1x2x32xf32>
    tpu.vector_store %arg5[%c4_169, %c0_170, %c0_171], %344 {strides = array<i32>} : memref<8x2x32xf32, #tpu.memory_space<vmem>>, vector<1x2x32xf32>,
    %c3_172 = arith.constant 3 : index
    %c0_173 = arith.constant 0 : index
    %c0_174 = arith.constant 0 : index
    %345 = vector.load %arg2[%c3_172, %c0_173, %c0_174] : memref<8x2x128xf32, #tpu.memory_space<vmem>>, vector<1x2x128xf32>
    %346 = vector.shape_cast %345 : vector<1x2x128xf32> to vector<2x128xf32>
    %c0_175 = arith.constant 0 : index
    %c0_176 = arith.constant 0 : index
    %347 = vector.load %arg9[%c0_175, %c0_176] : memref<2x32xf32, #tpu.memory_space<vmem>>, vector<2x32xf32>
    %348 = arith.truncf %347 : vector<2x32xf32> to vector<2x32xbf16>
    %c0_177 = arith.constant 0 : index
    %c0_178 = arith.constant 0 : index
    %349 = vector.load %arg4[%c0_177, %c0_178] : memref<32x128xbf16, #tpu.memory_space<vmem>>, vector<32x128xbf16>
    %cst_179 = arith.constant dense<0.000000e+00> : vector<2x128xf32>
    %350 = tpu.matmul %348, %349, %cst_179 {dimension_numbers = #tpu.dot_dimension_numbers<[1], [0], [0], [1], [0, 0, 1, 1], [], []>} : vector<2x32xbf16>, vector<32x128xbf16>, vector<2x128xf32> -> vector<2x128xf32>
    %351 = arith.addf %346, %350 : vector<2x128xf32>
    %c0_180 = arith.constant 0 : index
    %c0_181 = arith.constant 0 : index
    %352 = vector.load %arg10[%c0_180, %c0_181] : memref<2x32xf32, #tpu.memory_space<vmem>>, vector<2x32xf32>
    %353 = vector.extract_strided_slice %351 {offsets = [0, 0], sizes = [2, 32], strides = [1, 1]} : vector<2x128xf32> to vector<2x32xf32>
    %354 = arith.negf %353 : vector<2x32xf32>
    %355 = math.exp %354 : vector<2x32xf32>
    %cst_182 = arith.constant 1.000000e+00 : f32
    %356 = vector.broadcast %cst_182 : f32 to vector<2x32xf32>
    %357 = arith.addf %356, %355 : vector<2x32xf32>
    %358 = arith.divf %356, %357 : vector<2x32xf32>
    %359 = vector.extract_strided_slice %351 {offsets = [0, 32], sizes = [2, 32], strides = [1, 1]} : vector<2x128xf32> to vector<2x32xf32>
    %360 = arith.negf %359 : vector<2x32xf32>
    %361 = math.exp %360 : vector<2x32xf32>
    %cst_183 = arith.constant 1.000000e+00 : f32
    %362 = vector.broadcast %cst_183 : f32 to vector<2x32xf32>
    %363 = arith.addf %362, %361 : vector<2x32xf32>
    %364 = arith.divf %362, %363 : vector<2x32xf32>
    %365 = vector.extract_strided_slice %351 {offsets = [0, 64], sizes = [2, 32], strides = [1, 1]} : vector<2x128xf32> to vector<2x32xf32>
    %366 = math.tanh %365 : vector<2x32xf32>
    %367 = vector.extract_strided_slice %351 {offsets = [0, 96], sizes = [2, 32], strides = [1, 1]} : vector<2x128xf32> to vector<2x32xf32>
    %368 = arith.negf %367 : vector<2x32xf32>
    %369 = math.exp %368 : vector<2x32xf32>
    %cst_184 = arith.constant 1.000000e+00 : f32
    %370 = vector.broadcast %cst_184 : f32 to vector<2x32xf32>
    %371 = arith.addf %370, %369 : vector<2x32xf32>
    %372 = arith.divf %370, %371 : vector<2x32xf32>
    %373 = arith.mulf %364, %352 : vector<2x32xf32>
    %374 = arith.mulf %358, %366 : vector<2x32xf32>
    %375 = arith.addf %373, %374 : vector<2x32xf32>
    %376 = math.tanh %375 : vector<2x32xf32>
    %377 = arith.mulf %372, %376 : vector<2x32xf32>
    %c0_185 = arith.constant 0 : index
    %c0_186 = arith.constant 0 : index
    %378 = vector.load %arg9[%c0_185, %c0_186] : memref<2x32xf32, #tpu.memory_space<vmem>>, vector<2x32xf32>
    tpu.vector_store %arg9[%c0_185, %c0_186], %377 {strides = array<i32>} : memref<2x32xf32, #tpu.memory_space<vmem>>, vector<2x32xf32>,
    %c0_187 = arith.constant 0 : index
    %c0_188 = arith.constant 0 : index
    %379 = vector.load %arg10[%c0_187, %c0_188] : memref<2x32xf32, #tpu.memory_space<vmem>>, vector<2x32xf32>
    tpu.vector_store %arg10[%c0_187, %c0_188], %375 {strides = array<i32>} : memref<2x32xf32, #tpu.memory_space<vmem>>, vector<2x32xf32>,
    %c3_189 = arith.constant 3 : index
    %c0_190 = arith.constant 0 : index
    %c0_191 = arith.constant 0 : index
    %380 = vector.load %arg6[%c3_189, %c0_190, %c0_191] : memref<8x2x32xf32, #tpu.memory_space<vmem>>, vector<1x2x32xf32>
    %381 = vector.shape_cast %380 : vector<1x2x32xf32> to vector<2x32xf32>
    %382 = vector.shape_cast %377 : vector<2x32xf32> to vector<1x2x32xf32>
    tpu.vector_store %arg6[%c3_189, %c0_190, %c0_191], %382 {strides = array<i32>} : memref<8x2x32xf32, #tpu.memory_space<vmem>>, vector<1x2x32xf32>,
    %c5_192 = arith.constant 5 : index
    %c0_193 = arith.constant 0 : index
    %c0_194 = arith.constant 0 : index
    %383 = vector.load %arg1[%c5_192, %c0_193, %c0_194] : memref<8x2x128xf32, #tpu.memory_space<vmem>>, vector<1x2x128xf32>
    %384 = vector.shape_cast %383 : vector<1x2x128xf32> to vector<2x128xf32>
    %c0_195 = arith.constant 0 : index
    %c0_196 = arith.constant 0 : index
    %385 = vector.load %arg7[%c0_195, %c0_196] : memref<2x32xf32, #tpu.memory_space<vmem>>, vector<2x32xf32>
    %386 = arith.truncf %385 : vector<2x32xf32> to vector<2x32xbf16>
    %c0_197 = arith.constant 0 : index
    %c0_198 = arith.constant 0 : index
    %387 = vector.load %arg3[%c0_197, %c0_198] : memref<32x128xbf16, #tpu.memory_space<vmem>>, vector<32x128xbf16>
    %cst_199 = arith.constant dense<0.000000e+00> : vector<2x128xf32>
    %388 = tpu.matmul %386, %387, %cst_199 {dimension_numbers = #tpu.dot_dimension_numbers<[1], [0], [0], [1], [0, 0, 1, 1], [], []>} : vector<2x32xbf16>, vector<32x128xbf16>, vector<2x128xf32> -> vector<2x128xf32>
    %389 = arith.addf %384, %388 : vector<2x128xf32>
    %c0_200 = arith.constant 0 : index
    %c0_201 = arith.constant 0 : index
    %390 = vector.load %arg8[%c0_200, %c0_201] : memref<2x32xf32, #tpu.memory_space<vmem>>, vector<2x32xf32>
    %391 = vector.extract_strided_slice %389 {offsets = [0, 0], sizes = [2, 32], strides = [1, 1]} : vector<2x128xf32> to vector<2x32xf32>
    %392 = arith.negf %391 : vector<2x32xf32>
    %393 = math.exp %392 : vector<2x32xf32>
    %cst_202 = arith.constant 1.000000e+00 : f32
    %394 = vector.broadcast %cst_202 : f32 to vector<2x32xf32>
    %395 = arith.addf %394, %393 : vector<2x32xf32>
    %396 = arith.divf %394, %395 : vector<2x32xf32>
    %397 = vector.extract_strided_slice %389 {offsets = [0, 32], sizes = [2, 32], strides = [1, 1]} : vector<2x128xf32> to vector<2x32xf32>
    %398 = arith.negf %397 : vector<2x32xf32>
    %399 = math.exp %398 : vector<2x32xf32>
    %cst_203 = arith.constant 1.000000e+00 : f32
    %400 = vector.broadcast %cst_203 : f32 to vector<2x32xf32>
    %401 = arith.addf %400, %399 : vector<2x32xf32>
    %402 = arith.divf %400, %401 : vector<2x32xf32>
    %403 = vector.extract_strided_slice %389 {offsets = [0, 64], sizes = [2, 32], strides = [1, 1]} : vector<2x128xf32> to vector<2x32xf32>
    %404 = math.tanh %403 : vector<2x32xf32>
    %405 = vector.extract_strided_slice %389 {offsets = [0, 96], sizes = [2, 32], strides = [1, 1]} : vector<2x128xf32> to vector<2x32xf32>
    %406 = arith.negf %405 : vector<2x32xf32>
    %407 = math.exp %406 : vector<2x32xf32>
    %cst_204 = arith.constant 1.000000e+00 : f32
    %408 = vector.broadcast %cst_204 : f32 to vector<2x32xf32>
    %409 = arith.addf %408, %407 : vector<2x32xf32>
    %410 = arith.divf %408, %409 : vector<2x32xf32>
    %411 = arith.mulf %402, %390 : vector<2x32xf32>
    %412 = arith.mulf %396, %404 : vector<2x32xf32>
    %413 = arith.addf %411, %412 : vector<2x32xf32>
    %414 = math.tanh %413 : vector<2x32xf32>
    %415 = arith.mulf %410, %414 : vector<2x32xf32>
    %c0_205 = arith.constant 0 : index
    %c0_206 = arith.constant 0 : index
    %416 = vector.load %arg7[%c0_205, %c0_206] : memref<2x32xf32, #tpu.memory_space<vmem>>, vector<2x32xf32>
    tpu.vector_store %arg7[%c0_205, %c0_206], %415 {strides = array<i32>} : memref<2x32xf32, #tpu.memory_space<vmem>>, vector<2x32xf32>,
    %c0_207 = arith.constant 0 : index
    %c0_208 = arith.constant 0 : index
    %417 = vector.load %arg8[%c0_207, %c0_208] : memref<2x32xf32, #tpu.memory_space<vmem>>, vector<2x32xf32>
    tpu.vector_store %arg8[%c0_207, %c0_208], %413 {strides = array<i32>} : memref<2x32xf32, #tpu.memory_space<vmem>>, vector<2x32xf32>,
    %c5_209 = arith.constant 5 : index
    %c0_210 = arith.constant 0 : index
    %c0_211 = arith.constant 0 : index
    %418 = vector.load %arg5[%c5_209, %c0_210, %c0_211] : memref<8x2x32xf32, #tpu.memory_space<vmem>>, vector<1x2x32xf32>
    %419 = vector.shape_cast %418 : vector<1x2x32xf32> to vector<2x32xf32>
    %420 = vector.shape_cast %415 : vector<2x32xf32> to vector<1x2x32xf32>
    tpu.vector_store %arg5[%c5_209, %c0_210, %c0_211], %420 {strides = array<i32>} : memref<8x2x32xf32, #tpu.memory_space<vmem>>, vector<1x2x32xf32>,
    %c2_212 = arith.constant 2 : index
    %c0_213 = arith.constant 0 : index
    %c0_214 = arith.constant 0 : index
    %421 = vector.load %arg2[%c2_212, %c0_213, %c0_214] : memref<8x2x128xf32, #tpu.memory_space<vmem>>, vector<1x2x128xf32>
    %422 = vector.shape_cast %421 : vector<1x2x128xf32> to vector<2x128xf32>
    %c0_215 = arith.constant 0 : index
    %c0_216 = arith.constant 0 : index
    %423 = vector.load %arg9[%c0_215, %c0_216] : memref<2x32xf32, #tpu.memory_space<vmem>>, vector<2x32xf32>
    %424 = arith.truncf %423 : vector<2x32xf32> to vector<2x32xbf16>
    %c0_217 = arith.constant 0 : index
    %c0_218 = arith.constant 0 : index
    %425 = vector.load %arg4[%c0_217, %c0_218] : memref<32x128xbf16, #tpu.memory_space<vmem>>, vector<32x128xbf16>
    %cst_219 = arith.constant dense<0.000000e+00> : vector<2x128xf32>
    %426 = tpu.matmul %424, %425, %cst_219 {dimension_numbers = #tpu.dot_dimension_numbers<[1], [0], [0], [1], [0, 0, 1, 1], [], []>} : vector<2x32xbf16>, vector<32x128xbf16>, vector<2x128xf32> -> vector<2x128xf32>
    %427 = arith.addf %422, %426 : vector<2x128xf32>
    %c0_220 = arith.constant 0 : index
    %c0_221 = arith.constant 0 : index
    %428 = vector.load %arg10[%c0_220, %c0_221] : memref<2x32xf32, #tpu.memory_space<vmem>>, vector<2x32xf32>
    %429 = vector.extract_strided_slice %427 {offsets = [0, 0], sizes = [2, 32], strides = [1, 1]} : vector<2x128xf32> to vector<2x32xf32>
    %430 = arith.negf %429 : vector<2x32xf32>
    %431 = math.exp %430 : vector<2x32xf32>
    %cst_222 = arith.constant 1.000000e+00 : f32
    %432 = vector.broadcast %cst_222 : f32 to vector<2x32xf32>
    %433 = arith.addf %432, %431 : vector<2x32xf32>
    %434 = arith.divf %432, %433 : vector<2x32xf32>
    %435 = vector.extract_strided_slice %427 {offsets = [0, 32], sizes = [2, 32], strides = [1, 1]} : vector<2x128xf32> to vector<2x32xf32>
    %436 = arith.negf %435 : vector<2x32xf32>
    %437 = math.exp %436 : vector<2x32xf32>
    %cst_223 = arith.constant 1.000000e+00 : f32
    %438 = vector.broadcast %cst_223 : f32 to vector<2x32xf32>
    %439 = arith.addf %438, %437 : vector<2x32xf32>
    %440 = arith.divf %438, %439 : vector<2x32xf32>
    %441 = vector.extract_strided_slice %427 {offsets = [0, 64], sizes = [2, 32], strides = [1, 1]} : vector<2x128xf32> to vector<2x32xf32>
    %442 = math.tanh %441 : vector<2x32xf32>
    %443 = vector.extract_strided_slice %427 {offsets = [0, 96], sizes = [2, 32], strides = [1, 1]} : vector<2x128xf32> to vector<2x32xf32>
    %444 = arith.negf %443 : vector<2x32xf32>
    %445 = math.exp %444 : vector<2x32xf32>
    %cst_224 = arith.constant 1.000000e+00 : f32
    %446 = vector.broadcast %cst_224 : f32 to vector<2x32xf32>
    %447 = arith.addf %446, %445 : vector<2x32xf32>
    %448 = arith.divf %446, %447 : vector<2x32xf32>
    %449 = arith.mulf %440, %428 : vector<2x32xf32>
    %450 = arith.mulf %434, %442 : vector<2x32xf32>
    %451 = arith.addf %449, %450 : vector<2x32xf32>
    %452 = math.tanh %451 : vector<2x32xf32>
    %453 = arith.mulf %448, %452 : vector<2x32xf32>
    %c0_225 = arith.constant 0 : index
    %c0_226 = arith.constant 0 : index
    %454 = vector.load %arg9[%c0_225, %c0_226] : memref<2x32xf32, #tpu.memory_space<vmem>>, vector<2x32xf32>
    tpu.vector_store %arg9[%c0_225, %c0_226], %453 {strides = array<i32>} : memref<2x32xf32, #tpu.memory_space<vmem>>, vector<2x32xf32>,
    %c0_227 = arith.constant 0 : index
    %c0_228 = arith.constant 0 : index
    %455 = vector.load %arg10[%c0_227, %c0_228] : memref<2x32xf32, #tpu.memory_space<vmem>>, vector<2x32xf32>
    tpu.vector_store %arg10[%c0_227, %c0_228], %451 {strides = array<i32>} : memref<2x32xf32, #tpu.memory_space<vmem>>, vector<2x32xf32>,
    %c2_229 = arith.constant 2 : index
    %c0_230 = arith.constant 0 : index
    %c0_231 = arith.constant 0 : index
    %456 = vector.load %arg6[%c2_229, %c0_230, %c0_231] : memref<8x2x32xf32, #tpu.memory_space<vmem>>, vector<1x2x32xf32>
    %457 = vector.shape_cast %456 : vector<1x2x32xf32> to vector<2x32xf32>
    %458 = vector.shape_cast %453 : vector<2x32xf32> to vector<1x2x32xf32>
    tpu.vector_store %arg6[%c2_229, %c0_230, %c0_231], %458 {strides = array<i32>} : memref<8x2x32xf32, #tpu.memory_space<vmem>>, vector<1x2x32xf32>,
    %c6_232 = arith.constant 6 : index
    %c0_233 = arith.constant 0 : index
    %c0_234 = arith.constant 0 : index
    %459 = vector.load %arg1[%c6_232, %c0_233, %c0_234] : memref<8x2x128xf32, #tpu.memory_space<vmem>>, vector<1x2x128xf32>
    %460 = vector.shape_cast %459 : vector<1x2x128xf32> to vector<2x128xf32>
    %c0_235 = arith.constant 0 : index
    %c0_236 = arith.constant 0 : index
    %461 = vector.load %arg7[%c0_235, %c0_236] : memref<2x32xf32, #tpu.memory_space<vmem>>, vector<2x32xf32>
    %462 = arith.truncf %461 : vector<2x32xf32> to vector<2x32xbf16>
    %c0_237 = arith.constant 0 : index
    %c0_238 = arith.constant 0 : index
    %463 = vector.load %arg3[%c0_237, %c0_238] : memref<32x128xbf16, #tpu.memory_space<vmem>>, vector<32x128xbf16>
    %cst_239 = arith.constant dense<0.000000e+00> : vector<2x128xf32>
    %464 = tpu.matmul %462, %463, %cst_239 {dimension_numbers = #tpu.dot_dimension_numbers<[1], [0], [0], [1], [0, 0, 1, 1], [], []>} : vector<2x32xbf16>, vector<32x128xbf16>, vector<2x128xf32> -> vector<2x128xf32>
    %465 = arith.addf %460, %464 : vector<2x128xf32>
    %c0_240 = arith.constant 0 : index
    %c0_241 = arith.constant 0 : index
    %466 = vector.load %arg8[%c0_240, %c0_241] : memref<2x32xf32, #tpu.memory_space<vmem>>, vector<2x32xf32>
    %467 = vector.extract_strided_slice %465 {offsets = [0, 0], sizes = [2, 32], strides = [1, 1]} : vector<2x128xf32> to vector<2x32xf32>
    %468 = arith.negf %467 : vector<2x32xf32>
    %469 = math.exp %468 : vector<2x32xf32>
    %cst_242 = arith.constant 1.000000e+00 : f32
    %470 = vector.broadcast %cst_242 : f32 to vector<2x32xf32>
    %471 = arith.addf %470, %469 : vector<2x32xf32>
    %472 = arith.divf %470, %471 : vector<2x32xf32>
    %473 = vector.extract_strided_slice %465 {offsets = [0, 32], sizes = [2, 32], strides = [1, 1]} : vector<2x128xf32> to vector<2x32xf32>
    %474 = arith.negf %473 : vector<2x32xf32>
    %475 = math.exp %474 : vector<2x32xf32>
    %cst_243 = arith.constant 1.000000e+00 : f32
    %476 = vector.broadcast %cst_243 : f32 to vector<2x32xf32>
    %477 = arith.addf %476, %475 : vector<2x32xf32>
    %478 = arith.divf %476, %477 : vector<2x32xf32>
    %479 = vector.extract_strided_slice %465 {offsets = [0, 64], sizes = [2, 32], strides = [1, 1]} : vector<2x128xf32> to vector<2x32xf32>
    %480 = math.tanh %479 : vector<2x32xf32>
    %481 = vector.extract_strided_slice %465 {offsets = [0, 96], sizes = [2, 32], strides = [1, 1]} : vector<2x128xf32> to vector<2x32xf32>
    %482 = arith.negf %481 : vector<2x32xf32>
    %483 = math.exp %482 : vector<2x32xf32>
    %cst_244 = arith.constant 1.000000e+00 : f32
    %484 = vector.broadcast %cst_244 : f32 to vector<2x32xf32>
    %485 = arith.addf %484, %483 : vector<2x32xf32>
    %486 = arith.divf %484, %485 : vector<2x32xf32>
    %487 = arith.mulf %478, %466 : vector<2x32xf32>
    %488 = arith.mulf %472, %480 : vector<2x32xf32>
    %489 = arith.addf %487, %488 : vector<2x32xf32>
    %490 = math.tanh %489 : vector<2x32xf32>
    %491 = arith.mulf %486, %490 : vector<2x32xf32>
    %c0_245 = arith.constant 0 : index
    %c0_246 = arith.constant 0 : index
    %492 = vector.load %arg7[%c0_245, %c0_246] : memref<2x32xf32, #tpu.memory_space<vmem>>, vector<2x32xf32>
    tpu.vector_store %arg7[%c0_245, %c0_246], %491 {strides = array<i32>} : memref<2x32xf32, #tpu.memory_space<vmem>>, vector<2x32xf32>,
    %c0_247 = arith.constant 0 : index
    %c0_248 = arith.constant 0 : index
    %493 = vector.load %arg8[%c0_247, %c0_248] : memref<2x32xf32, #tpu.memory_space<vmem>>, vector<2x32xf32>
    tpu.vector_store %arg8[%c0_247, %c0_248], %489 {strides = array<i32>} : memref<2x32xf32, #tpu.memory_space<vmem>>, vector<2x32xf32>,
    %c6_249 = arith.constant 6 : index
    %c0_250 = arith.constant 0 : index
    %c0_251 = arith.constant 0 : index
    %494 = vector.load %arg5[%c6_249, %c0_250, %c0_251] : memref<8x2x32xf32, #tpu.memory_space<vmem>>, vector<1x2x32xf32>
    %495 = vector.shape_cast %494 : vector<1x2x32xf32> to vector<2x32xf32>
    %496 = vector.shape_cast %491 : vector<2x32xf32> to vector<1x2x32xf32>
    tpu.vector_store %arg5[%c6_249, %c0_250, %c0_251], %496 {strides = array<i32>} : memref<8x2x32xf32, #tpu.memory_space<vmem>>, vector<1x2x32xf32>,
    %c1_252 = arith.constant 1 : index
    %c0_253 = arith.constant 0 : index
    %c0_254 = arith.constant 0 : index
    %497 = vector.load %arg2[%c1_252, %c0_253, %c0_254] : memref<8x2x128xf32, #tpu.memory_space<vmem>>, vector<1x2x128xf32>
    %498 = vector.shape_cast %497 : vector<1x2x128xf32> to vector<2x128xf32>
    %c0_255 = arith.constant 0 : index
    %c0_256 = arith.constant 0 : index
    %499 = vector.load %arg9[%c0_255, %c0_256] : memref<2x32xf32, #tpu.memory_space<vmem>>, vector<2x32xf32>
    %500 = arith.truncf %499 : vector<2x32xf32> to vector<2x32xbf16>
    %c0_257 = arith.constant 0 : index
    %c0_258 = arith.constant 0 : index
    %501 = vector.load %arg4[%c0_257, %c0_258] : memref<32x128xbf16, #tpu.memory_space<vmem>>, vector<32x128xbf16>
    %cst_259 = arith.constant dense<0.000000e+00> : vector<2x128xf32>
    %502 = tpu.matmul %500, %501, %cst_259 {dimension_numbers = #tpu.dot_dimension_numbers<[1], [0], [0], [1], [0, 0, 1, 1], [], []>} : vector<2x32xbf16>, vector<32x128xbf16>, vector<2x128xf32> -> vector<2x128xf32>
    %503 = arith.addf %498, %502 : vector<2x128xf32>
    %c0_260 = arith.constant 0 : index
    %c0_261 = arith.constant 0 : index
    %504 = vector.load %arg10[%c0_260, %c0_261] : memref<2x32xf32, #tpu.memory_space<vmem>>, vector<2x32xf32>
    %505 = vector.extract_strided_slice %503 {offsets = [0, 0], sizes = [2, 32], strides = [1, 1]} : vector<2x128xf32> to vector<2x32xf32>
    %506 = arith.negf %505 : vector<2x32xf32>
    %507 = math.exp %506 : vector<2x32xf32>
    %cst_262 = arith.constant 1.000000e+00 : f32
    %508 = vector.broadcast %cst_262 : f32 to vector<2x32xf32>
    %509 = arith.addf %508, %507 : vector<2x32xf32>
    %510 = arith.divf %508, %509 : vector<2x32xf32>
    %511 = vector.extract_strided_slice %503 {offsets = [0, 32], sizes = [2, 32], strides = [1, 1]} : vector<2x128xf32> to vector<2x32xf32>
    %512 = arith.negf %511 : vector<2x32xf32>
    %513 = math.exp %512 : vector<2x32xf32>
    %cst_263 = arith.constant 1.000000e+00 : f32
    %514 = vector.broadcast %cst_263 : f32 to vector<2x32xf32>
    %515 = arith.addf %514, %513 : vector<2x32xf32>
    %516 = arith.divf %514, %515 : vector<2x32xf32>
    %517 = vector.extract_strided_slice %503 {offsets = [0, 64], sizes = [2, 32], strides = [1, 1]} : vector<2x128xf32> to vector<2x32xf32>
    %518 = math.tanh %517 : vector<2x32xf32>
    %519 = vector.extract_strided_slice %503 {offsets = [0, 96], sizes = [2, 32], strides = [1, 1]} : vector<2x128xf32> to vector<2x32xf32>
    %520 = arith.negf %519 : vector<2x32xf32>
    %521 = math.exp %520 : vector<2x32xf32>
    %cst_264 = arith.constant 1.000000e+00 : f32
    %522 = vector.broadcast %cst_264 : f32 to vector<2x32xf32>
    %523 = arith.addf %522, %521 : vector<2x32xf32>
    %524 = arith.divf %522, %523 : vector<2x32xf32>
    %525 = arith.mulf %516, %504 : vector<2x32xf32>
    %526 = arith.mulf %510, %518 : vector<2x32xf32>
    %527 = arith.addf %525, %526 : vector<2x32xf32>
    %528 = math.tanh %527 : vector<2x32xf32>
    %529 = arith.mulf %524, %528 : vector<2x32xf32>
    %c0_265 = arith.constant 0 : index
    %c0_266 = arith.constant 0 : index
    %530 = vector.load %arg9[%c0_265, %c0_266] : memref<2x32xf32, #tpu.memory_space<vmem>>, vector<2x32xf32>
    tpu.vector_store %arg9[%c0_265, %c0_266], %529 {strides = array<i32>} : memref<2x32xf32, #tpu.memory_space<vmem>>, vector<2x32xf32>,
    %c0_267 = arith.constant 0 : index
    %c0_268 = arith.constant 0 : index
    %531 = vector.load %arg10[%c0_267, %c0_268] : memref<2x32xf32, #tpu.memory_space<vmem>>, vector<2x32xf32>
    tpu.vector_store %arg10[%c0_267, %c0_268], %527 {strides = array<i32>} : memref<2x32xf32, #tpu.memory_space<vmem>>, vector<2x32xf32>,
    %c1_269 = arith.constant 1 : index
    %c0_270 = arith.constant 0 : index
    %c0_271 = arith.constant 0 : index
    %532 = vector.load %arg6[%c1_269, %c0_270, %c0_271] : memref<8x2x32xf32, #tpu.memory_space<vmem>>, vector<1x2x32xf32>
    %533 = vector.shape_cast %532 : vector<1x2x32xf32> to vector<2x32xf32>
    %534 = vector.shape_cast %529 : vector<2x32xf32> to vector<1x2x32xf32>
    tpu.vector_store %arg6[%c1_269, %c0_270, %c0_271], %534 {strides = array<i32>} : memref<8x2x32xf32, #tpu.memory_space<vmem>>, vector<1x2x32xf32>,
    %c7_272 = arith.constant 7 : index
    %c0_273 = arith.constant 0 : index
    %c0_274 = arith.constant 0 : index
    %535 = vector.load %arg1[%c7_272, %c0_273, %c0_274] : memref<8x2x128xf32, #tpu.memory_space<vmem>>, vector<1x2x128xf32>
    %536 = vector.shape_cast %535 : vector<1x2x128xf32> to vector<2x128xf32>
    %c0_275 = arith.constant 0 : index
    %c0_276 = arith.constant 0 : index
    %537 = vector.load %arg7[%c0_275, %c0_276] : memref<2x32xf32, #tpu.memory_space<vmem>>, vector<2x32xf32>
    %538 = arith.truncf %537 : vector<2x32xf32> to vector<2x32xbf16>
    %c0_277 = arith.constant 0 : index
    %c0_278 = arith.constant 0 : index
    %539 = vector.load %arg3[%c0_277, %c0_278] : memref<32x128xbf16, #tpu.memory_space<vmem>>, vector<32x128xbf16>
    %cst_279 = arith.constant dense<0.000000e+00> : vector<2x128xf32>
    %540 = tpu.matmul %538, %539, %cst_279 {dimension_numbers = #tpu.dot_dimension_numbers<[1], [0], [0], [1], [0, 0, 1, 1], [], []>} : vector<2x32xbf16>, vector<32x128xbf16>, vector<2x128xf32> -> vector<2x128xf32>
    %541 = arith.addf %536, %540 : vector<2x128xf32>
    %c0_280 = arith.constant 0 : index
    %c0_281 = arith.constant 0 : index
    %542 = vector.load %arg8[%c0_280, %c0_281] : memref<2x32xf32, #tpu.memory_space<vmem>>, vector<2x32xf32>
    %543 = vector.extract_strided_slice %541 {offsets = [0, 0], sizes = [2, 32], strides = [1, 1]} : vector<2x128xf32> to vector<2x32xf32>
    %544 = arith.negf %543 : vector<2x32xf32>
    %545 = math.exp %544 : vector<2x32xf32>
    %cst_282 = arith.constant 1.000000e+00 : f32
    %546 = vector.broadcast %cst_282 : f32 to vector<2x32xf32>
    %547 = arith.addf %546, %545 : vector<2x32xf32>
    %548 = arith.divf %546, %547 : vector<2x32xf32>
    %549 = vector.extract_strided_slice %541 {offsets = [0, 32], sizes = [2, 32], strides = [1, 1]} : vector<2x128xf32> to vector<2x32xf32>
    %550 = arith.negf %549 : vector<2x32xf32>
    %551 = math.exp %550 : vector<2x32xf32>
    %cst_283 = arith.constant 1.000000e+00 : f32
    %552 = vector.broadcast %cst_283 : f32 to vector<2x32xf32>
    %553 = arith.addf %552, %551 : vector<2x32xf32>
    %554 = arith.divf %552, %553 : vector<2x32xf32>
    %555 = vector.extract_strided_slice %541 {offsets = [0, 64], sizes = [2, 32], strides = [1, 1]} : vector<2x128xf32> to vector<2x32xf32>
    %556 = math.tanh %555 : vector<2x32xf32>
    %557 = vector.extract_strided_slice %541 {offsets = [0, 96], sizes = [2, 32], strides = [1, 1]} : vector<2x128xf32> to vector<2x32xf32>
    %558 = arith.negf %557 : vector<2x32xf32>
    %559 = math.exp %558 : vector<2x32xf32>
    %cst_284 = arith.constant 1.000000e+00 : f32
    %560 = vector.broadcast %cst_284 : f32 to vector<2x32xf32>
    %561 = arith.addf %560, %559 : vector<2x32xf32>
    %562 = arith.divf %560, %561 : vector<2x32xf32>
    %563 = arith.mulf %554, %542 : vector<2x32xf32>
    %564 = arith.mulf %548, %556 : vector<2x32xf32>
    %565 = arith.addf %563, %564 : vector<2x32xf32>
    %566 = math.tanh %565 : vector<2x32xf32>
    %567 = arith.mulf %562, %566 : vector<2x32xf32>
    %c0_285 = arith.constant 0 : index
    %c0_286 = arith.constant 0 : index
    %568 = vector.load %arg7[%c0_285, %c0_286] : memref<2x32xf32, #tpu.memory_space<vmem>>, vector<2x32xf32>
    tpu.vector_store %arg7[%c0_285, %c0_286], %567 {strides = array<i32>} : memref<2x32xf32, #tpu.memory_space<vmem>>, vector<2x32xf32>,
    %c0_287 = arith.constant 0 : index
    %c0_288 = arith.constant 0 : index
    %569 = vector.load %arg8[%c0_287, %c0_288] : memref<2x32xf32, #tpu.memory_space<vmem>>, vector<2x32xf32>
    tpu.vector_store %arg8[%c0_287, %c0_288], %565 {strides = array<i32>} : memref<2x32xf32, #tpu.memory_space<vmem>>, vector<2x32xf32>,
    %c7_289 = arith.constant 7 : index
    %c0_290 = arith.constant 0 : index
    %c0_291 = arith.constant 0 : index
    %570 = vector.load %arg5[%c7_289, %c0_290, %c0_291] : memref<8x2x32xf32, #tpu.memory_space<vmem>>, vector<1x2x32xf32>
    %571 = vector.shape_cast %570 : vector<1x2x32xf32> to vector<2x32xf32>
    %572 = vector.shape_cast %567 : vector<2x32xf32> to vector<1x2x32xf32>
    tpu.vector_store %arg5[%c7_289, %c0_290, %c0_291], %572 {strides = array<i32>} : memref<8x2x32xf32, #tpu.memory_space<vmem>>, vector<1x2x32xf32>,
    %c0_292 = arith.constant 0 : index
    %c0_293 = arith.constant 0 : index
    %c0_294 = arith.constant 0 : index
    %573 = vector.load %arg2[%c0_292, %c0_293, %c0_294] : memref<8x2x128xf32, #tpu.memory_space<vmem>>, vector<1x2x128xf32>
    %574 = vector.shape_cast %573 : vector<1x2x128xf32> to vector<2x128xf32>
    %c0_295 = arith.constant 0 : index
    %c0_296 = arith.constant 0 : index
    %575 = vector.load %arg9[%c0_295, %c0_296] : memref<2x32xf32, #tpu.memory_space<vmem>>, vector<2x32xf32>
    %576 = arith.truncf %575 : vector<2x32xf32> to vector<2x32xbf16>
    %c0_297 = arith.constant 0 : index
    %c0_298 = arith.constant 0 : index
    %577 = vector.load %arg4[%c0_297, %c0_298] : memref<32x128xbf16, #tpu.memory_space<vmem>>, vector<32x128xbf16>
    %cst_299 = arith.constant dense<0.000000e+00> : vector<2x128xf32>
    %578 = tpu.matmul %576, %577, %cst_299 {dimension_numbers = #tpu.dot_dimension_numbers<[1], [0], [0], [1], [0, 0, 1, 1], [], []>} : vector<2x32xbf16>, vector<32x128xbf16>, vector<2x128xf32> -> vector<2x128xf32>
    %579 = arith.addf %574, %578 : vector<2x128xf32>
    %c0_300 = arith.constant 0 : index
    %c0_301 = arith.constant 0 : index
    %580 = vector.load %arg10[%c0_300, %c0_301] : memref<2x32xf32, #tpu.memory_space<vmem>>, vector<2x32xf32>
    %581 = vector.extract_strided_slice %579 {offsets = [0, 0], sizes = [2, 32], strides = [1, 1]} : vector<2x128xf32> to vector<2x32xf32>
    %582 = arith.negf %581 : vector<2x32xf32>
    %583 = math.exp %582 : vector<2x32xf32>
    %cst_302 = arith.constant 1.000000e+00 : f32
    %584 = vector.broadcast %cst_302 : f32 to vector<2x32xf32>
    %585 = arith.addf %584, %583 : vector<2x32xf32>
    %586 = arith.divf %584, %585 : vector<2x32xf32>
    %587 = vector.extract_strided_slice %579 {offsets = [0, 32], sizes = [2, 32], strides = [1, 1]} : vector<2x128xf32> to vector<2x32xf32>
    %588 = arith.negf %587 : vector<2x32xf32>
    %589 = math.exp %588 : vector<2x32xf32>
    %cst_303 = arith.constant 1.000000e+00 : f32
    %590 = vector.broadcast %cst_303 : f32 to vector<2x32xf32>
    %591 = arith.addf %590, %589 : vector<2x32xf32>
    %592 = arith.divf %590, %591 : vector<2x32xf32>
    %593 = vector.extract_strided_slice %579 {offsets = [0, 64], sizes = [2, 32], strides = [1, 1]} : vector<2x128xf32> to vector<2x32xf32>
    %594 = math.tanh %593 : vector<2x32xf32>
    %595 = vector.extract_strided_slice %579 {offsets = [0, 96], sizes = [2, 32], strides = [1, 1]} : vector<2x128xf32> to vector<2x32xf32>
    %596 = arith.negf %595 : vector<2x32xf32>
    %597 = math.exp %596 : vector<2x32xf32>
    %cst_304 = arith.constant 1.000000e+00 : f32
    %598 = vector.broadcast %cst_304 : f32 to vector<2x32xf32>
    %599 = arith.addf %598, %597 : vector<2x32xf32>
    %600 = arith.divf %598, %599 : vector<2x32xf32>
    %601 = arith.mulf %592, %580 : vector<2x32xf32>
    %602 = arith.mulf %586, %594 : vector<2x32xf32>
    %603 = arith.addf %601, %602 : vector<2x32xf32>
    %604 = math.tanh %603 : vector<2x32xf32>
    %605 = arith.mulf %600, %604 : vector<2x32xf32>
    %c0_305 = arith.constant 0 : index
    %c0_306 = arith.constant 0 : index
    %606 = vector.load %arg9[%c0_305, %c0_306] : memref<2x32xf32, #tpu.memory_space<vmem>>, vector<2x32xf32>
    tpu.vector_store %arg9[%c0_305, %c0_306], %605 {strides = array<i32>} : memref<2x32xf32, #tpu.memory_space<vmem>>, vector<2x32xf32>,
    %c0_307 = arith.constant 0 : index
    %c0_308 = arith.constant 0 : index
    %607 = vector.load %arg10[%c0_307, %c0_308] : memref<2x32xf32, #tpu.memory_space<vmem>>, vector<2x32xf32>
    tpu.vector_store %arg10[%c0_307, %c0_308], %603 {strides = array<i32>} : memref<2x32xf32, #tpu.memory_space<vmem>>, vector<2x32xf32>,
    %c0_309 = arith.constant 0 : index
    %c0_310 = arith.constant 0 : index
    %c0_311 = arith.constant 0 : index
    %608 = vector.load %arg6[%c0_309, %c0_310, %c0_311] : memref<8x2x32xf32, #tpu.memory_space<vmem>>, vector<1x2x32xf32>
    %609 = vector.shape_cast %608 : vector<1x2x32xf32> to vector<2x32xf32>
    %610 = vector.shape_cast %605 : vector<2x32xf32> to vector<1x2x32xf32>
    tpu.vector_store %arg6[%c0_309, %c0_310, %c0_311], %610 {strides = array<i32>} : memref<8x2x32xf32, #tpu.memory_space<vmem>>, vector<1x2x32xf32>,
    return
  }
  func.func @transform_0(%arg0: i32) -> (i32, i32, i32) {
    %c0_i32 = arith.constant 0 : i32
    %c0_i32_0 = arith.constant 0 : i32
    %c0_i32_1 = arith.constant 0 : i32
    return %arg0, %c0_i32, %c0_i32_0 : i32, i32, i32
  }
  func.func @transform_1(%arg0: i32) -> (i32, i32, i32) {
    %c0_i32 = arith.constant 0 : i32
    %0 = arith.subi %c0_i32, %arg0 : i32
    %c0_i32_0 = arith.constant 0 : i32
    %c0_i32_1 = arith.constant 0 : i32
    %c0_i32_2 = arith.constant 0 : i32
    return %0, %c0_i32_0, %c0_i32_1 : i32, i32, i32
  }
  func.func @transform_2(%arg0: i32) -> (i32, i32) {
    %c0_i32 = arith.constant 0 : i32
    %c0_i32_0 = arith.constant 0 : i32
    %c0_i32_1 = arith.constant 0 : i32
    return %c0_i32, %c0_i32_0 : i32, i32
  }
  func.func @transform_3(%arg0: i32) -> (i32, i32) {
    %c0_i32 = arith.constant 0 : i32
    %c0_i32_0 = arith.constant 0 : i32
    %c0_i32_1 = arith.constant 0 : i32
    return %c0_i32, %c0_i32_0 : i32, i32
  }
  func.func @transform_4(%arg0: i32) -> (i32, i32, i32) {
    %c0_i32 = arith.constant 0 : i32
    %c0_i32_0 = arith.constant 0 : i32
    %c0_i32_1 = arith.constant 0 : i32
    return %arg0, %c0_i32, %c0_i32_0 : i32, i32, i32
  }
  func.func @transform_5(%arg0: i32) -> (i32, i32, i32) {
    %c0_i32 = arith.constant 0 : i32
    %0 = arith.subi %c0_i32, %arg0 : i32
    %c0_i32_0 = arith.constant 0 : i32
    %c0_i32_1 = arith.constant 0 : i32
    %c0_i32_2 = arith.constant 0 : i32
    return %0, %c0_i32_0, %c0_i32_1 : i32, i32, i32
  }
}

</mosaic_0001>

<llo_original>
// kernel: multi_level_rnn_encoder.2
$region0: #{multi_level_rnn_encoder.2}
  #allocation0 [shape = 'u32[]', space=smem, size = 0x4, offset = 0x4, fixed_abs, tag = 'smem constant byte address 0x4 - core index']
  #allocation1 [shape = 'u32[72,128]{1,0:T(1,128)}', space=vmem, size = 0x9000, scoped, tag = 'internal scratch']
  #allocation2 [shape = 'f32[2,32]{1,0:T(2,128)}', space=vmem, size = 0x400, scoped, tag = 'scratch operand']
  #allocation3 [shape = 'f32[2,32]{1,0:T(2,128)}', space=vmem, size = 0x400, scoped, tag = 'scratch operand']
  #allocation4 [shape = 'f32[2,32]{1,0:T(2,128)}', space=vmem, size = 0x400, scoped, tag = 'scratch operand']
  #allocation5 [shape = 'f32[2,32]{1,0:T(2,128)}', space=vmem, size = 0x400, scoped, tag = 'scratch operand']
  %s0 = inlined_call_operand.vmem [shape: f32[8,2,128], index: 0, kind: input, shape index: {}]
  %s1 = inlined_call_operand.vmem [shape: f32[8,2,128], index: 1, kind: input, shape index: {}]
  %s2 = inlined_call_operand.vmem [shape: bf16[32,128], index: 2, kind: input, shape index: {}]
  %s3 = inlined_call_operand.vmem [shape: bf16[32,128], index: 3, kind: input, shape index: {}]
  %s4 = inlined_call_operand.vmem [shape: f32[8,2,32], index: 4, kind: output, shape index: {0}]
  %s5 = inlined_call_operand.vmem [shape: f32[8,2,32], index: 5, kind: output, shape index: {1}]
  %6 = xla_tuple %s4, %s5
  %s7 = sld [smem:[#allocation0]]
  $region38: #{multi_level_rnn_encoder.2} parent=0
    _
  %s9 = ssub.s32 1, %s7
  %s10 = scalar_select 0, %s9, %s7
  // Predicated region
  $region2: #{multi_level_rnn_encoder.2} parent=0 // pred_check
    _
  $region3: #{multi_level_rnn_encoder.2} parent=0 // pred_check_branch
    %12 = sbr.rel (0) target = $region5
  $region4: #{multi_level_rnn_encoder.2} parent=0 // pred_region
    _
  $region5: #{multi_level_rnn_encoder.2} parent=0 // pred_fallthru
    _
  // Predicated region
  $region6: #{multi_level_rnn_encoder.2} parent=0 // pred_check
    _
  $region7: #{multi_level_rnn_encoder.2} parent=0 // pred_check_branch
    %14 = sbr.rel (0) target = $region9
  $region8: #{multi_level_rnn_encoder.2} parent=0 // pred_region
    %s15 = ssub.s32 0, 0
    %s16 = smul.u32 8, %s15
    %p17 = scmp.lt.s32.totalorder %s16, 7
    %s18 = scalar_select %p17, %s16, 7
    %s19 = smul.addr %s18, 2
    %s20 = scalar_lea.vmem %s1, %s19
    %s21 = ssub.s32 0, 0
    %s22 = smul.u32 8, %s21
  $region9: #{multi_level_rnn_encoder.2} parent=0 // pred_fallthru
    _
  // Predicated region
  $region10: #{multi_level_rnn_encoder.2} parent=0 // pred_check
    _
  $region11: #{multi_level_rnn_encoder.2} parent=0 // pred_check_branch
    %24 = sbr.rel (0) target = $region13
  $region12: #{multi_level_rnn_encoder.2} parent=0 // pred_region
    _
  $region13: #{multi_level_rnn_encoder.2} parent=0 // pred_fallthru
    _
  // Predicated region
  $region14: #{multi_level_rnn_encoder.2} parent=0 // pred_check
    _
  $region15: #{multi_level_rnn_encoder.2} parent=0 // pred_check_branch
    %26 = sbr.rel (0) target = $region17
  $region16: #{multi_level_rnn_encoder.2} parent=0 // pred_region
    _
  $region17: #{multi_level_rnn_encoder.2} parent=0 // pred_fallthru
    _
  %s27 = ssub.s32 0, 0
  %s28 = smul.u32 8, %s27
  %p29 = scmp.lt.s32.totalorder %s28, 7
  %s30 = scalar_select %p29, %s28, 7
  %s31 = smul.addr %s30, 2
  %s32 = scalar_lea.vmem %s1, %s31
  %s33 = ssub.s32 0, 0
  %s34 = smul.u32 8, %s33
  %p35 = scmp.lt.s32.totalorder %s34, 7
  %s36 = scalar_select %p35, %s34, 7
  %s37 = smul.addr %s36, 2
  %s38 = scalar_lea.vmem %s5, %s37
  %s39 = ssub.s32 0, 0
  %s40 = smul.u32 8, %s39
  %p41 = scmp.lt.s32.totalorder %s40, 7
  %s42 = scalar_select %p41, %s40, 7
  %s43 = smul.addr %s42, 2
  %s44 = scalar_lea.vmem %s1, %s43
  %s45 = ssub.s32 0, 0
  %s46 = smul.u32 8, %s45
  %s47 = ssub.s32 0, 0
  %s48 = smul.u32 8, %s47
  %p49 = scmp.lt.s32.totalorder %s48, 7
  %s50 = scalar_select %p49, %s48, 7
  %s51 = smul.addr %s50, 2
  %s52 = scalar_lea.vmem %s5, %s51
  %s53 = ssub.s32 0, 0
  %s54 = smul.u32 8, %s53
  %p56 = scmp.eq.s32.totalorder 0, 0
  // Predicated region
  $region18: #{multi_level_rnn_encoder.2} parent=0 // pred_check
    %p57 = pneg %p56
  $region19: #{multi_level_rnn_encoder.2} parent=0 // pred_check_branch
    %59 = sbr.rel (%p57) target = $region21
  $region20: #{multi_level_rnn_encoder.2} parent=0 // pred_region
    %vm60 = vcmask 254976
    %61 = vst.msk [vmem:[#allocation2] sm:$0x3] %vm60, 0.0
    %62 = vst.msk [vmem:[#allocation3] sm:$0x3] %vm60, 0.0
    %63 = vst.msk [vmem:[#allocation4] sm:$0x3] %vm60, 0.0
    %64 = vst.msk [vmem:[#allocation5] sm:$0x3] %vm60, 0.0
  $region21: #{multi_level_rnn_encoder.2} parent=0 // pred_fallthru
    _
  %v65 = vld [vmem:[%s0] sm:$0x3]
  %v66 = vld [vmem:[#allocation2] sm:$0x3]
  %v67 = vpack.c.bf16 %v66, %v66
  %v68 = vld [vmem:[%s2] sm:$0xf]
  %v69 = vld [vmem:[%s2 + $0x4] sm:$0xf]
  %v70 = vld [vmem:[%s2 + $0x8] sm:$0xf]
  %v71 = vld [vmem:[%s2 + $0xc] sm:$0xf]
  %v76 = vunpack.c.l.b16 %v68
  %v77 = vunpack.c.l.b16 %v69
  %v78 = vunpack.c.l.b16 %v70
  %v79 = vunpack.c.l.b16 %v71
  %v80 = vpack.c.b16 %v77, %v76
  %v81 = vpack.c.b16 %v79, %v78
  %vm84 = vcmask 261120
  %v86 = vsel %vm84, %v67, 0
  %88 = vmatpush.bf16.msra.mxu0 0
  %89 = vmatpush.bf16.msra.mxu0 0
  %90 = vmatpush.bf16.msra.mxu0 0
  %91 = vmatpush.bf16.msra.mxu0 0
  %92 = vmatpush.bf16.msra.mxu0 0
  %93 = vmatpush.bf16.msra.mxu0 0
  %94 = vmatpush.bf16.msra.mxu0 %v81
  %95 = vmatpush.bf16.msra.mxu0 %v80
  %96 = vmatmul.bf16.gmra.mxu0 %v86
  %v97 = vpop.f32.mrf.mxu0
  %v98 = vadd.f32 0.0, %v97
  %v99 = vpop.f32.mrf.mxu0
  %100 = vdwg.mxu0
  %v101 = vadd.f32 %v65, %v98
  %v102 = vld [vmem:[#allocation3] sm:$0x3]
  %v103 = vxor.u32 %v101, 2147483648
  %v104 = vmul.f32 %v103, 1.442695
  %v105 = vpow.pop %v104
  %v106 = vadd.f32 %v105, 1.0
  %v107 = vrcp.pop %v106
  %v108 = vmul.f32 %v106, %v107
  %v109 = vsub.f32 1.0, %v108
  %v110 = vmul.f32 %v107, %v109
  %v111 = vadd.f32 %v107, %v110
  %vm112 = vweird.f32 %v106
  %vm113 = vweird.f32 %v107
  %vm114 = vmor %vm112, %vm113
  %v115 = vsel %vm114, %v107, %v111
  %v116 = vand.u32 2147483647, %v106
  %vm117 = vcmp.eq.f32.partialorder %v116, 8.507059e+37
  %v118 = vand.u32 %v106, 2147483648
  %v119 = vor.u32 1.1754944e-38, %v118
  %v120 = vsel %vm117, %v119, %v115
  %v121 = vmul.f32 1.0, %v120
  %v122 = vtanh.pop %v101
  %124 = vrot.lane.b32.xlu0 %v102, 32
  %v125 = vpop.permute.xlu0 %124
  %v127 = vmul.f32 %v121, %v125
  %129 = vrot.lane.b32.xlu0 %v122, 64
  %v130 = vpop.permute.xlu0 %129
  %v132 = vmul.f32 %v121, %v130
  %134 = vrot.lane.b32.xlu0 %v132, 32
  %v135 = vpop.permute.xlu0 %134
  %v137 = vadd.f32 %v127, %v135
  %v138 = vtanh.pop %v137
  %140 = vrot.lane.b32.xlu0 %v138, 64
  %v141 = vpop.permute.xlu0 %140
  %v143 = vmul.f32 %v121, %v141
  %145 = vrot.lane.b32.xlu0 %v143, 32
  %v146 = vpop.permute.xlu0 %145
  %vm148 = vcmask 254976
  %149 = vst.msk [vmem:[#allocation2] sm:$0x3] %vm148, %v146
  %151 = vrot.lane.b32.xlu0 %v137, 96
  %v152 = vpop.permute.xlu0 %151
  %154 = vst.msk [vmem:[#allocation3] sm:$0x3] %vm148, %v152
  %155 = vst.msk [vmem:[%s4] sm:$0x3] %vm148, %v146
  %s156 = scalar_lea.vmem %s44, 14
  %v157 = vld [vmem:[%s156] sm:$0x3]
  %v158 = vld [vmem:[#allocation4] sm:$0x3]
  %v159 = vpack.c.bf16 %v158, %v158
  %v160 = vld [vmem:[%s3] sm:$0xf]
  %v161 = vld [vmem:[%s3 + $0x4] sm:$0xf]
  %v162 = vld [vmem:[%s3 + $0x8] sm:$0xf]
  %v163 = vld [vmem:[%s3 + $0xc] sm:$0xf]
  %v168 = vunpack.c.l.b16 %v160
  %v169 = vunpack.c.l.b16 %v161
  %v170 = vunpack.c.l.b16 %v162
  %v171 = vunpack.c.l.b16 %v163
  %v172 = vpack.c.b16 %v169, %v168
  %v173 = vpack.c.b16 %v171, %v170
  %v177 = vsel %vm84, %v159, 0
  %179 = vmatpush.bf16.msra.mxu0 0
  %180 = vmatpush.bf16.msra.mxu0 0
  %181 = vmatpush.bf16.msra.mxu0 0
  %182 = vmatpush.bf16.msra.mxu0 0
  %183 = vmatpush.bf16.msra.mxu0 0
  %184 = vmatpush.bf16.msra.mxu0 0
  %185 = vmatpush.bf16.msra.mxu0 %v173
  %186 = vmatpush.bf16.msra.mxu0 %v172
  %187 = vmatmul.bf16.gmra.mxu0 %v177
  %v188 = vpop.f32.mrf.mxu0
  %v189 = vadd.f32 0.0, %v188
  %v190 = vpop.f32.mrf.mxu0
  %191 = vdwg.mxu0
  %v192 = vadd.f32 %v157, %v189
  %v193 = vld [vmem:[#allocation5] sm:$0x3]
  %v194 = vxor.u32 %v192, 2147483648
  %v195 = vmul.f32 %v194, 1.442695
  %v196 = vpow.pop %v195
  %v197 = vadd.f32 %v196, 1.0
  %v198 = vrcp.pop %v197
  %v199 = vmul.f32 %v197, %v198
  %v200 = vsub.f32 1.0, %v199
  %v201 = vmul.f32 %v198, %v200
  %v202 = vadd.f32 %v198, %v201
  %vm203 = vweird.f32 %v197
  %vm204 = vweird.f32 %v198
  %vm205 = vmor %vm203, %vm204
  %v206 = vsel %vm205, %v198, %v202
  %v207 = vand.u32 2147483647, %v197
  %vm208 = vcmp.eq.f32.partialorder %v207, 8.507059e+37
  %v209 = vand.u32 %v197, 2147483648
  %v210 = vor.u32 1.1754944e-38, %v209
  %v211 = vsel %vm208, %v210, %v206
  %v212 = vmul.f32 1.0, %v211
  %v213 = vtanh.pop %v192
  %215 = vrot.lane.b32.xlu0 %v193, 32
  %v216 = vpop.permute.xlu0 %215
  %v218 = vmul.f32 %v212, %v216
  %220 = vrot.lane.b32.xlu0 %v213, 64
  %v221 = vpop.permute.xlu0 %220
  %v223 = vmul.f32 %v212, %v221
  %225 = vrot.lane.b32.xlu0 %v223, 32
  %v226 = vpop.permute.xlu0 %225
  %v228 = vadd.f32 %v218, %v226
  %v229 = vtanh.pop %v228
  %231 = vrot.lane.b32.xlu0 %v229, 64
  %v232 = vpop.permute.xlu0 %231
  %v234 = vmul.f32 %v212, %v232
  %236 = vrot.lane.b32.xlu0 %v234, 32
  %v237 = vpop.permute.xlu0 %236
  %239 = vst.msk [vmem:[#allocation4] sm:$0x3] %vm148, %v237
  %241 = vrot.lane.b32.xlu0 %v228, 96
  %v242 = vpop.permute.xlu0 %241
  %244 = vst.msk [vmem:[#allocation5] sm:$0x3] %vm148, %v242
  %s245 = scalar_lea.vmem %s52, 14
  %246 = vst.msk [vmem:[%s245] sm:$0x3] %vm148, %v237
  %s247 = scalar_lea.vmem %s0, 2
  %v248 = vld [vmem:[%s247] sm:$0x3]
  %v249 = vld [vmem:[#allocation2] sm:$0x3]
  %v250 = vpack.c.bf16 %v249, %v249
  %v251 = vld [vmem:[%s2] sm:$0xf]
  %v252 = vld [vmem:[%s2 + $0x4] sm:$0xf]
  %v253 = vld [vmem:[%s2 + $0x8] sm:$0xf]
  %v254 = vld [vmem:[%s2 + $0xc] sm:$0xf]
  %v259 = vunpack.c.l.b16 %v251
  %v260 = vunpack.c.l.b16 %v252
  %v261 = vunpack.c.l.b16 %v253
  %v262 = vunpack.c.l.b16 %v254
  %v263 = vpack.c.b16 %v260, %v259
  %v264 = vpack.c.b16 %v262, %v261
  %v268 = vsel %vm84, %v250, 0
  %270 = vmatpush.bf16.msra.mxu0 0
  %271 = vmatpush.bf16.msra.mxu0 0
  %272 = vmatpush.bf16.msra.mxu0 0
  %273 = vmatpush.bf16.msra.mxu0 0
  %274 = vmatpush.bf16.msra.mxu0 0
  %275 = vmatpush.bf16.msra.mxu0 0
  %276 = vmatpush.bf16.msra.mxu0 %v264
  %277 = vmatpush.bf16.msra.mxu0 %v263
  %278 = vmatmul.bf16.gmra.mxu0 %v268
  %v279 = vpop.f32.mrf.mxu0
  %v280 = vadd.f32 0.0, %v279
  %v281 = vpop.f32.mrf.mxu0
  %282 = vdwg.mxu0
  %v283 = vadd.f32 %v248, %v280
  %v284 = vld [vmem:[#allocation3] sm:$0x3]
  %v285 = vxor.u32 %v283, 2147483648
  %v286 = vmul.f32 %v285, 1.442695
  %v287 = vpow.pop %v286
  %v288 = vadd.f32 %v287, 1.0
  %v289 = vrcp.pop %v288
  %v290 = vmul.f32 %v288, %v289
  %v291 = vsub.f32 1.0, %v290
  %v292 = vmul.f32 %v289, %v291
  %v293 = vadd.f32 %v289, %v292
  %vm294 = vweird.f32 %v288
  %vm295 = vweird.f32 %v289
  %vm296 = vmor %vm294, %vm295
  %v297 = vsel %vm296, %v289, %v293
  %v298 = vand.u32 2147483647, %v288
  %vm299 = vcmp.eq.f32.partialorder %v298, 8.507059e+37
  %v300 = vand.u32 %v288, 2147483648
  %v301 = vor.u32 1.1754944e-38, %v300
  %v302 = vsel %vm299, %v301, %v297
  %v303 = vmul.f32 1.0, %v302
  %v304 = vtanh.pop %v283
  %306 = vrot.lane.b32.xlu0 %v284, 32
  %v307 = vpop.permute.xlu0 %306
  %v309 = vmul.f32 %v303, %v307
  %311 = vrot.lane.b32.xlu0 %v304, 64
  %v312 = vpop.permute.xlu0 %311
  %v314 = vmul.f32 %v303, %v312
  %316 = vrot.lane.b32.xlu0 %v314, 32
  %v317 = vpop.permute.xlu0 %316
  %v319 = vadd.f32 %v309, %v317
  %v320 = vtanh.pop %v319
  %322 = vrot.lane.b32.xlu0 %v320, 64
  %v323 = vpop.permute.xlu0 %322
  %v325 = vmul.f32 %v303, %v323
  %327 = vrot.lane.b32.xlu0 %v325, 32
  %v328 = vpop.permute.xlu0 %327
  %330 = vst.msk [vmem:[#allocation2] sm:$0x3] %vm148, %v328
  %332 = vrot.lane.b32.xlu0 %v319, 96
  %v333 = vpop.permute.xlu0 %332
  %335 = vst.msk [vmem:[#allocation3] sm:$0x3] %vm148, %v333
  %s336 = scalar_lea.vmem %s4, 2
  %337 = vst.msk [vmem:[%s336] sm:$0x3] %vm148, %v328
  %s338 = scalar_lea.vmem %s44, 12
  %v339 = vld [vmem:[%s338] sm:$0x3]
  %v340 = vld [vmem:[#allocation4] sm:$0x3]
  %v341 = vpack.c.bf16 %v340, %v340
  %v342 = vld [vmem:[%s3] sm:$0xf]
  %v343 = vld [vmem:[%s3 + $0x4] sm:$0xf]
  %v344 = vld [vmem:[%s3 + $0x8] sm:$0xf]
  %v345 = vld [vmem:[%s3 + $0xc] sm:$0xf]
  %v350 = vunpack.c.l.b16 %v342
  %v351 = vunpack.c.l.b16 %v343
  %v352 = vunpack.c.l.b16 %v344
  %v353 = vunpack.c.l.b16 %v345
  %v354 = vpack.c.b16 %v351, %v350
  %v355 = vpack.c.b16 %v353, %v352
  %v359 = vsel %vm84, %v341, 0
  %361 = vmatpush.bf16.msra.mxu0 0
  %362 = vmatpush.bf16.msra.mxu0 0
  %363 = vmatpush.bf16.msra.mxu0 0
  %364 = vmatpush.bf16.msra.mxu0 0
  %365 = vmatpush.bf16.msra.mxu0 0
  %366 = vmatpush.bf16.msra.mxu0 0
  %367 = vmatpush.bf16.msra.mxu0 %v355
  %368 = vmatpush.bf16.msra.mxu0 %v354
  %369 = vmatmul.bf16.gmra.mxu0 %v359
  %v370 = vpop.f32.mrf.mxu0
  %v371 = vadd.f32 0.0, %v370
  %v372 = vpop.f32.mrf.mxu0
  %373 = vdwg.mxu0
  %v374 = vadd.f32 %v339, %v371
  %v375 = vld [vmem:[#allocation5] sm:$0x3]
  %v376 = vxor.u32 %v374, 2147483648
  %v377 = vmul.f32 %v376, 1.442695
  %v378 = vpow.pop %v377
  %v379 = vadd.f32 %v378, 1.0
  %v380 = vrcp.pop %v379
  %v381 = vmul.f32 %v379, %v380
  %v382 = vsub.f32 1.0, %v381
  %v383 = vmul.f32 %v380, %v382
  %v384 = vadd.f32 %v380, %v383
  %vm385 = vweird.f32 %v379
  %vm386 = vweird.f32 %v380
  %vm387 = vmor %vm385, %vm386
  %v388 = vsel %vm387, %v380, %v384
  %v389 = vand.u32 2147483647, %v379
  %vm390 = vcmp.eq.f32.partialorder %v389, 8.507059e+37
  %v391 = vand.u32 %v379, 2147483648
  %v392 = vor.u32 1.1754944e-38, %v391
  %v393 = vsel %vm390, %v392, %v388
  %v394 = vmul.f32 1.0, %v393
  %v395 = vtanh.pop %v374
  %397 = vrot.lane.b32.xlu0 %v375, 32
  %v398 = vpop.permute.xlu0 %397
  %v400 = vmul.f32 %v394, %v398
  %402 = vrot.lane.b32.xlu0 %v395, 64
  %v403 = vpop.permute.xlu0 %402
  %v405 = vmul.f32 %v394, %v403
  %407 = vrot.lane.b32.xlu0 %v405, 32
  %v408 = vpop.permute.xlu0 %407
  %v410 = vadd.f32 %v400, %v408
  %v411 = vtanh.pop %v410
  %413 = vrot.lane.b32.xlu0 %v411, 64
  %v414 = vpop.permute.xlu0 %413
  %v416 = vmul.f32 %v394, %v414
  %418 = vrot.lane.b32.xlu0 %v416, 32
  %v419 = vpop.permute.xlu0 %418
  %421 = vst.msk [vmem:[#allocation4] sm:$0x3] %vm148, %v419
  %423 = vrot.lane.b32.xlu0 %v410, 96
  %v424 = vpop.permute.xlu0 %423
  %426 = vst.msk [vmem:[#allocation5] sm:$0x3] %vm148, %v424
  %s427 = scalar_lea.vmem %s52, 12
  %428 = vst.msk [vmem:[%s427] sm:$0x3] %vm148, %v419
  %s429 = scalar_lea.vmem %s0, 4
  %v430 = vld [vmem:[%s429] sm:$0x3]
  %v431 = vld [vmem:[#allocation2] sm:$0x3]
  %v432 = vpack.c.bf16 %v431, %v431
  %v433 = vld [vmem:[%s2] sm:$0xf]
  %v434 = vld [vmem:[%s2 + $0x4] sm:$0xf]
  %v435 = vld [vmem:[%s2 + $0x8] sm:$0xf]
  %v436 = vld [vmem:[%s2 + $0xc] sm:$0xf]
  %v441 = vunpack.c.l.b16 %v433
  %v442 = vunpack.c.l.b16 %v434
  %v443 = vunpack.c.l.b16 %v435
  %v444 = vunpack.c.l.b16 %v436
  %v445 = vpack.c.b16 %v442, %v441
  %v446 = vpack.c.b16 %v444, %v443
  %v450 = vsel %vm84, %v432, 0
  %452 = vmatpush.bf16.msra.mxu0 0
  %453 = vmatpush.bf16.msra.mxu0 0
  %454 = vmatpush.bf16.msra.mxu0 0
  %455 = vmatpush.bf16.msra.mxu0 0
  %456 = vmatpush.bf16.msra.mxu0 0
  %457 = vmatpush.bf16.msra.mxu0 0
  %458 = vmatpush.bf16.msra.mxu0 %v446
  %459 = vmatpush.bf16.msra.mxu0 %v445
  %460 = vmatmul.bf16.gmra.mxu0 %v450
  %v461 = vpop.f32.mrf.mxu0
  %v462 = vadd.f32 0.0, %v461
  %v463 = vpop.f32.mrf.mxu0
  %464 = vdwg.mxu0
  %v465 = vadd.f32 %v430, %v462
  %v466 = vld [vmem:[#allocation3] sm:$0x3]
  %v467 = vxor.u32 %v465, 2147483648
  %v468 = vmul.f32 %v467, 1.442695
  %v469 = vpow.pop %v468
  %v470 = vadd.f32 %v469, 1.0
  %v471 = vrcp.pop %v470
  %v472 = vmul.f32 %v470, %v471
  %v473 = vsub.f32 1.0, %v472
  %v474 = vmul.f32 %v471, %v473
  %v475 = vadd.f32 %v471, %v474
  %vm476 = vweird.f32 %v470
  %vm477 = vweird.f32 %v471
  %vm478 = vmor %vm476, %vm477
  %v479 = vsel %vm478, %v471, %v475
  %v480 = vand.u32 2147483647, %v470
  %vm481 = vcmp.eq.f32.partialorder %v480, 8.507059e+37
  %v482 = vand.u32 %v470, 2147483648
  %v483 = vor.u32 1.1754944e-38, %v482
  %v484 = vsel %vm481, %v483, %v479
  %v485 = vmul.f32 1.0, %v484
  %v486 = vtanh.pop %v465
  %488 = vrot.lane.b32.xlu0 %v466, 32
  %v489 = vpop.permute.xlu0 %488
  %v491 = vmul.f32 %v485, %v489
  %493 = vrot.lane.b32.xlu0 %v486, 64
  %v494 = vpop.permute.xlu0 %493
  %v496 = vmul.f32 %v485, %v494
  %498 = vrot.lane.b32.xlu0 %v496, 32
  %v499 = vpop.permute.xlu0 %498
  %v501 = vadd.f32 %v491, %v499
  %v502 = vtanh.pop %v501
  %504 = vrot.lane.b32.xlu0 %v502, 64
  %v505 = vpop.permute.xlu0 %504
  %v507 = vmul.f32 %v485, %v505
  %509 = vrot.lane.b32.xlu0 %v507, 32
  %v510 = vpop.permute.xlu0 %509
  %512 = vst.msk [vmem:[#allocation2] sm:$0x3] %vm148, %v510
  %514 = vrot.lane.b32.xlu0 %v501, 96
  %v515 = vpop.permute.xlu0 %514
  %517 = vst.msk [vmem:[#allocation3] sm:$0x3] %vm148, %v515
  %s518 = scalar_lea.vmem %s4, 4
  %519 = vst.msk [vmem:[%s518] sm:$0x3] %vm148, %v510
  %s520 = scalar_lea.vmem %s44, 10
  %v521 = vld [vmem:[%s520] sm:$0x3]
  %v522 = vld [vmem:[#allocation4] sm:$0x3]
  %v523 = vpack.c.bf16 %v522, %v522
  %v524 = vld [vmem:[%s3] sm:$0xf]
  %v525 = vld [vmem:[%s3 + $0x4] sm:$0xf]
  %v526 = vld [vmem:[%s3 + $0x8] sm:$0xf]
  %v527 = vld [vmem:[%s3 + $0xc] sm:$0xf]
  %v532 = vunpack.c.l.b16 %v524
  %v533 = vunpack.c.l.b16 %v525
  %v534 = vunpack.c.l.b16 %v526
  %v535 = vunpack.c.l.b16 %v527
  %v536 = vpack.c.b16 %v533, %v532
  %v537 = vpack.c.b16 %v535, %v534
  %v541 = vsel %vm84, %v523, 0
  %543 = vmatpush.bf16.msra.mxu0 0
  %544 = vmatpush.bf16.msra.mxu0 0
  %545 = vmatpush.bf16.msra.mxu0 0
  %546 = vmatpush.bf16.msra.mxu0 0
  %547 = vmatpush.bf16.msra.mxu0 0
  %548 = vmatpush.bf16.msra.mxu0 0
  %549 = vmatpush.bf16.msra.mxu0 %v537
  %550 = vmatpush.bf16.msra.mxu0 %v536
  %551 = vmatmul.bf16.gmra.mxu0 %v541
  %v552 = vpop.f32.mrf.mxu0
  %v553 = vadd.f32 0.0, %v552
  %v554 = vpop.f32.mrf.mxu0
  %555 = vdwg.mxu0
  %v556 = vadd.f32 %v521, %v553
  %v557 = vld [vmem:[#allocation5] sm:$0x3]
  %v558 = vxor.u32 %v556, 2147483648
  %v559 = vmul.f32 %v558, 1.442695
  %v560 = vpow.pop %v559
  %v561 = vadd.f32 %v560, 1.0
  %v562 = vrcp.pop %v561
  %v563 = vmul.f32 %v561, %v562
  %v564 = vsub.f32 1.0, %v563
  %v565 = vmul.f32 %v562, %v564
  %v566 = vadd.f32 %v562, %v565
  %vm567 = vweird.f32 %v561
  %vm568 = vweird.f32 %v562
  %vm569 = vmor %vm567, %vm568
  %v570 = vsel %vm569, %v562, %v566
  %v571 = vand.u32 2147483647, %v561
  %vm572 = vcmp.eq.f32.partialorder %v571, 8.507059e+37
  %v573 = vand.u32 %v561, 2147483648
  %v574 = vor.u32 1.1754944e-38, %v573
  %v575 = vsel %vm572, %v574, %v570
  %v576 = vmul.f32 1.0, %v575
  %v577 = vtanh.pop %v556
  %579 = vrot.lane.b32.xlu0 %v557, 32
  %v580 = vpop.permute.xlu0 %579
  %v582 = vmul.f32 %v576, %v580
  %584 = vrot.lane.b32.xlu0 %v577, 64
  %v585 = vpop.permute.xlu0 %584
  %v587 = vmul.f32 %v576, %v585
  %589 = vrot.lane.b32.xlu0 %v587, 32
  %v590 = vpop.permute.xlu0 %589
  %v592 = vadd.f32 %v582, %v590
  %v593 = vtanh.pop %v592
  %595 = vrot.lane.b32.xlu0 %v593, 64
  %v596 = vpop.permute.xlu0 %595
  %v598 = vmul.f32 %v576, %v596
  %600 = vrot.lane.b32.xlu0 %v598, 32
  %v601 = vpop.permute.xlu0 %600
  %603 = vst.msk [vmem:[#allocation4] sm:$0x3] %vm148, %v601
  %605 = vrot.lane.b32.xlu0 %v592, 96
  %v606 = vpop.permute.xlu0 %605
  %608 = vst.msk [vmem:[#allocation5] sm:$0x3] %vm148, %v606
  %s609 = scalar_lea.vmem %s52, 10
  %610 = vst.msk [vmem:[%s609] sm:$0x3] %vm148, %v601
  %s611 = scalar_lea.vmem %s0, 6
  %v612 = vld [vmem:[%s611] sm:$0x3]
  %v613 = vld [vmem:[#allocation2] sm:$0x3]
  %v614 = vpack.c.bf16 %v613, %v613
  %v615 = vld [vmem:[%s2] sm:$0xf]
  %v616 = vld [vmem:[%s2 + $0x4] sm:$0xf]
  %v617 = vld [vmem:[%s2 + $0x8] sm:$0xf]
  %v618 = vld [vmem:[%s2 + $0xc] sm:$0xf]
  %v623 = vunpack.c.l.b16 %v615
  %v624 = vunpack.c.l.b16 %v616
  %v625 = vunpack.c.l.b16 %v617
  %v626 = vunpack.c.l.b16 %v618
  %v627 = vpack.c.b16 %v624, %v623
  %v628 = vpack.c.b16 %v626, %v625
  %v632 = vsel %vm84, %v614, 0
  %634 = vmatpush.bf16.msra.mxu0 0
  %635 = vmatpush.bf16.msra.mxu0 0
  %636 = vmatpush.bf16.msra.mxu0 0
  %637 = vmatpush.bf16.msra.mxu0 0
  %638 = vmatpush.bf16.msra.mxu0 0
  %639 = vmatpush.bf16.msra.mxu0 0
  %640 = vmatpush.bf16.msra.mxu0 %v628
  %641 = vmatpush.bf16.msra.mxu0 %v627
  %642 = vmatmul.bf16.gmra.mxu0 %v632
  %v643 = vpop.f32.mrf.mxu0
  %v644 = vadd.f32 0.0, %v643
  %v645 = vpop.f32.mrf.mxu0
  %646 = vdwg.mxu0
  %v647 = vadd.f32 %v612, %v644
  %v648 = vld [vmem:[#allocation3] sm:$0x3]
  %v649 = vxor.u32 %v647, 2147483648
  %v650 = vmul.f32 %v649, 1.442695
  %v651 = vpow.pop %v650
  %v652 = vadd.f32 %v651, 1.0
  %v653 = vrcp.pop %v652
  %v654 = vmul.f32 %v652, %v653
  %v655 = vsub.f32 1.0, %v654
  %v656 = vmul.f32 %v653, %v655
  %v657 = vadd.f32 %v653, %v656
  %vm658 = vweird.f32 %v652
  %vm659 = vweird.f32 %v653
  %vm660 = vmor %vm658, %vm659
  %v661 = vsel %vm660, %v653, %v657
  %v662 = vand.u32 2147483647, %v652
  %vm663 = vcmp.eq.f32.partialorder %v662, 8.507059e+37
  %v664 = vand.u32 %v652, 2147483648
  %v665 = vor.u32 1.1754944e-38, %v664
  %v666 = vsel %vm663, %v665, %v661
  %v667 = vmul.f32 1.0, %v666
  %v668 = vtanh.pop %v647
  %670 = vrot.lane.b32.xlu0 %v648, 32
  %v671 = vpop.permute.xlu0 %670
  %v673 = vmul.f32 %v667, %v671
  %675 = vrot.lane.b32.xlu0 %v668, 64
  %v676 = vpop.permute.xlu0 %675
  %v678 = vmul.f32 %v667, %v676
  %680 = vrot.lane.b32.xlu0 %v678, 32
  %v681 = vpop.permute.xlu0 %680
  %v683 = vadd.f32 %v673, %v681
  %v684 = vtanh.pop %v683
  %686 = vrot.lane.b32.xlu0 %v684, 64
  %v687 = vpop.permute.xlu0 %686
  %v689 = vmul.f32 %v667, %v687
  %691 = vrot.lane.b32.xlu0 %v689, 32
  %v692 = vpop.permute.xlu0 %691
  %694 = vst.msk [vmem:[#allocation2] sm:$0x3] %vm148, %v692
  %696 = vrot.lane.b32.xlu0 %v683, 96
  %v697 = vpop.permute.xlu0 %696
  %699 = vst.msk [vmem:[#allocation3] sm:$0x3] %vm148, %v697
  %s700 = scalar_lea.vmem %s4, 6
  %701 = vst.msk [vmem:[%s700] sm:$0x3] %vm148, %v692
  %s702 = scalar_lea.vmem %s44, 8
  %v703 = vld [vmem:[%s702] sm:$0x3]
  %v704 = vld [vmem:[#allocation4] sm:$0x3]
  %v705 = vpack.c.bf16 %v704, %v704
  %v706 = vld [vmem:[%s3] sm:$0xf]
  %v707 = vld [vmem:[%s3 + $0x4] sm:$0xf]
  %v708 = vld [vmem:[%s3 + $0x8] sm:$0xf]
  %v709 = vld [vmem:[%s3 + $0xc] sm:$0xf]
  %v714 = vunpack.c.l.b16 %v706
  %v715 = vunpack.c.l.b16 %v707
  %v716 = vunpack.c.l.b16 %v708
  %v717 = vunpack.c.l.b16 %v709
  %v718 = vpack.c.b16 %v715, %v714
  %v719 = vpack.c.b16 %v717, %v716
  %v723 = vsel %vm84, %v705, 0
  %725 = vmatpush.bf16.msra.mxu0 0
  %726 = vmatpush.bf16.msra.mxu0 0
  %727 = vmatpush.bf16.msra.mxu0 0
  %728 = vmatpush.bf16.msra.mxu0 0
  %729 = vmatpush.bf16.msra.mxu0 0
  %730 = vmatpush.bf16.msra.mxu0 0
  %731 = vmatpush.bf16.msra.mxu0 %v719
  %732 = vmatpush.bf16.msra.mxu0 %v718
  %733 = vmatmul.bf16.gmra.mxu0 %v723
  %v734 = vpop.f32.mrf.mxu0
  %v735 = vadd.f32 0.0, %v734
  %v736 = vpop.f32.mrf.mxu0
  %737 = vdwg.mxu0
  %v738 = vadd.f32 %v703, %v735
  %v739 = vld [vmem:[#allocation5] sm:$0x3]
  %v740 = vxor.u32 %v738, 2147483648
  %v741 = vmul.f32 %v740, 1.442695
  %v742 = vpow.pop %v741
  %v743 = vadd.f32 %v742, 1.0
  %v744 = vrcp.pop %v743
  %v745 = vmul.f32 %v743, %v744
  %v746 = vsub.f32 1.0, %v745
  %v747 = vmul.f32 %v744, %v746
  %v748 = vadd.f32 %v744, %v747
  %vm749 = vweird.f32 %v743
  %vm750 = vweird.f32 %v744
  %vm751 = vmor %vm749, %vm750
  %v752 = vsel %vm751, %v744, %v748
  %v753 = vand.u32 2147483647, %v743
  %vm754 = vcmp.eq.f32.partialorder %v753, 8.507059e+37
  %v755 = vand.u32 %v743, 2147483648
  %v756 = vor.u32 1.1754944e-38, %v755
  %v757 = vsel %vm754, %v756, %v752
  %v758 = vmul.f32 1.0, %v757
  %v759 = vtanh.pop %v738
  %761 = vrot.lane.b32.xlu0 %v739, 32
  %v762 = vpop.permute.xlu0 %761
  %v764 = vmul.f32 %v758, %v762
  %766 = vrot.lane.b32.xlu0 %v759, 64
  %v767 = vpop.permute.xlu0 %766
  %v769 = vmul.f32 %v758, %v767
  %771 = vrot.lane.b32.xlu0 %v769, 32
  %v772 = vpop.permute.xlu0 %771
  %v774 = vadd.f32 %v764, %v772
  %v775 = vtanh.pop %v774
  %777 = vrot.lane.b32.xlu0 %v775, 64
  %v778 = vpop.permute.xlu0 %777
  %v780 = vmul.f32 %v758, %v778
  %782 = vrot.lane.b32.xlu0 %v780, 32
  %v783 = vpop.permute.xlu0 %782
  %785 = vst.msk [vmem:[#allocation4] sm:$0x3] %vm148, %v783
  %787 = vrot.lane.b32.xlu0 %v774, 96
  %v788 = vpop.permute.xlu0 %787
  %790 = vst.msk [vmem:[#allocation5] sm:$0x3] %vm148, %v788
  %s791 = scalar_lea.vmem %s52, 8
  %792 = vst.msk [vmem:[%s791] sm:$0x3] %vm148, %v783
  %s793 = scalar_lea.vmem %s0, 8
  %v794 = vld [vmem:[%s793] sm:$0x3]
  %v795 = vld [vmem:[#allocation2] sm:$0x3]
  %v796 = vpack.c.bf16 %v795, %v795
  %v797 = vld [vmem:[%s2] sm:$0xf]
  %v798 = vld [vmem:[%s2 + $0x4] sm:$0xf]
  %v799 = vld [vmem:[%s2 + $0x8] sm:$0xf]
  %v800 = vld [vmem:[%s2 + $0xc] sm:$0xf]
  %v805 = vunpack.c.l.b16 %v797
  %v806 = vunpack.c.l.b16 %v798
  %v807 = vunpack.c.l.b16 %v799
  %v808 = vunpack.c.l.b16 %v800
  %v809 = vpack.c.b16 %v806, %v805
  %v810 = vpack.c.b16 %v808, %v807
  %v814 = vsel %vm84, %v796, 0
  %816 = vmatpush.bf16.msra.mxu0 0
  %817 = vmatpush.bf16.msra.mxu0 0
  %818 = vmatpush.bf16.msra.mxu0 0
  %819 = vmatpush.bf16.msra.mxu0 0
  %820 = vmatpush.bf16.msra.mxu0 0
  %821 = vmatpush.bf16.msra.mxu0 0
  %822 = vmatpush.bf16.msra.mxu0 %v810
  %823 = vmatpush.bf16.msra.mxu0 %v809
  %824 = vmatmul.bf16.gmra.mxu0 %v814
  %v825 = vpop.f32.mrf.mxu0
  %v826 = vadd.f32 0.0, %v825
  %v827 = vpop.f32.mrf.mxu0
  %828 = vdwg.mxu0
  %v829 = vadd.f32 %v794, %v826
  %v830 = vld [vmem:[#allocation3] sm:$0x3]
  %v831 = vxor.u32 %v829, 2147483648
  %v832 = vmul.f32 %v831, 1.442695
  %v833 = vpow.pop %v832
  %v834 = vadd.f32 %v833, 1.0
  %v835 = vrcp.pop %v834
  %v836 = vmul.f32 %v834, %v835
  %v837 = vsub.f32 1.0, %v836
  %v838 = vmul.f32 %v835, %v837
  %v839 = vadd.f32 %v835, %v838
  %vm840 = vweird.f32 %v834
  %vm841 = vweird.f32 %v835
  %vm842 = vmor %vm840, %vm841
  %v843 = vsel %vm842, %v835, %v839
  %v844 = vand.u32 2147483647, %v834
  %vm845 = vcmp.eq.f32.partialorder %v844, 8.507059e+37
  %v846 = vand.u32 %v834, 2147483648
  %v847 = vor.u32 1.1754944e-38, %v846
  %v848 = vsel %vm845, %v847, %v843
  %v849 = vmul.f32 1.0, %v848
  %v850 = vtanh.pop %v829
  %852 = vrot.lane.b32.xlu0 %v830, 32
  %v853 = vpop.permute.xlu0 %852
  %v855 = vmul.f32 %v849, %v853
  %857 = vrot.lane.b32.xlu0 %v850, 64
  %v858 = vpop.permute.xlu0 %857
  %v860 = vmul.f32 %v849, %v858
  %862 = vrot.lane.b32.xlu0 %v860, 32
  %v863 = vpop.permute.xlu0 %862
  %v865 = vadd.f32 %v855, %v863
  %v866 = vtanh.pop %v865
  %868 = vrot.lane.b32.xlu0 %v866, 64
  %v869 = vpop.permute.xlu0 %868
  %v871 = vmul.f32 %v849, %v869
  %873 = vrot.lane.b32.xlu0 %v871, 32
  %v874 = vpop.permute.xlu0 %873
  %876 = vst.msk [vmem:[#allocation2] sm:$0x3] %vm148, %v874
  %878 = vrot.lane.b32.xlu0 %v865, 96
  %v879 = vpop.permute.xlu0 %878
  %881 = vst.msk [vmem:[#allocation3] sm:$0x3] %vm148, %v879
  %s882 = scalar_lea.vmem %s4, 8
  %883 = vst.msk [vmem:[%s882] sm:$0x3] %vm148, %v874
  %s884 = scalar_lea.vmem %s44, 6
  %v885 = vld [vmem:[%s884] sm:$0x3]
  %v886 = vld [vmem:[#allocation4] sm:$0x3]
  %v887 = vpack.c.bf16 %v886, %v886
  %v888 = vld [vmem:[%s3] sm:$0xf]
  %v889 = vld [vmem:[%s3 + $0x4] sm:$0xf]
  %v890 = vld [vmem:[%s3 + $0x8] sm:$0xf]
  %v891 = vld [vmem:[%s3 + $0xc] sm:$0xf]
  %v896 = vunpack.c.l.b16 %v888
  %v897 = vunpack.c.l.b16 %v889
  %v898 = vunpack.c.l.b16 %v890
  %v899 = vunpack.c.l.b16 %v891
  %v900 = vpack.c.b16 %v897, %v896
  %v901 = vpack.c.b16 %v899, %v898
  %v905 = vsel %vm84, %v887, 0
  %907 = vmatpush.bf16.msra.mxu0 0
  %908 = vmatpush.bf16.msra.mxu0 0
  %909 = vmatpush.bf16.msra.mxu0 0
  %910 = vmatpush.bf16.msra.mxu0 0
  %911 = vmatpush.bf16.msra.mxu0 0
  %912 = vmatpush.bf16.msra.mxu0 0
  %913 = vmatpush.bf16.msra.mxu0 %v901
  %914 = vmatpush.bf16.msra.mxu0 %v900
  %915 = vmatmul.bf16.gmra.mxu0 %v905
  %v916 = vpop.f32.mrf.mxu0
  %v917 = vadd.f32 0.0, %v916
  %v918 = vpop.f32.mrf.mxu0
  %919 = vdwg.mxu0
  %v920 = vadd.f32 %v885, %v917
  %v921 = vld [vmem:[#allocation5] sm:$0x3]
  %v922 = vxor.u32 %v920, 2147483648
  %v923 = vmul.f32 %v922, 1.442695
  %v924 = vpow.pop %v923
  %v925 = vadd.f32 %v924, 1.0
  %v926 = vrcp.pop %v925
  %v927 = vmul.f32 %v925, %v926
  %v928 = vsub.f32 1.0, %v927
  %v929 = vmul.f32 %v926, %v928
  %v930 = vadd.f32 %v926, %v929
  %vm931 = vweird.f32 %v925
  %vm932 = vweird.f32 %v926
  %vm933 = vmor %vm931, %vm932
  %v934 = vsel %vm933, %v926, %v930
  %v935 = vand.u32 2147483647, %v925
  %vm936 = vcmp.eq.f32.partialorder %v935, 8.507059e+37
  %v937 = vand.u32 %v925, 2147483648
  %v938 = vor.u32 1.1754944e-38, %v937
  %v939 = vsel %vm936, %v938, %v934
  %v940 = vmul.f32 1.0, %v939
  %v941 = vtanh.pop %v920
  %943 = vrot.lane.b32.xlu0 %v921, 32
  %v944 = vpop.permute.xlu0 %943
  %v946 = vmul.f32 %v940, %v944
  %948 = vrot.lane.b32.xlu0 %v941, 64
  %v949 = vpop.permute.xlu0 %948
  %v951 = vmul.f32 %v940, %v949
  %953 = vrot.lane.b32.xlu0 %v951, 32
  %v954 = vpop.permute.xlu0 %953
  %v956 = vadd.f32 %v946, %v954
  %v957 = vtanh.pop %v956
  %959 = vrot.lane.b32.xlu0 %v957, 64
  %v960 = vpop.permute.xlu0 %959
  %v962 = vmul.f32 %v940, %v960
  %964 = vrot.lane.b32.xlu0 %v962, 32
  %v965 = vpop.permute.xlu0 %964
  %967 = vst.msk [vmem:[#allocation4] sm:$0x3] %vm148, %v965
  %969 = vrot.lane.b32.xlu0 %v956, 96
  %v970 = vpop.permute.xlu0 %969
  %972 = vst.msk [vmem:[#allocation5] sm:$0x3] %vm148, %v970
  %s973 = scalar_lea.vmem %s52, 6
  %974 = vst.msk [vmem:[%s973] sm:$0x3] %vm148, %v965
  %s975 = scalar_lea.vmem %s0, 10
  %v976 = vld [vmem:[%s975] sm:$0x3]
  %v977 = vld [vmem:[#allocation2] sm:$0x3]
  %v978 = vpack.c.bf16 %v977, %v977
  %v979 = vld [vmem:[%s2] sm:$0xf]
  %v980 = vld [vmem:[%s2 + $0x4] sm:$0xf]
  %v981 = vld [vmem:[%s2 + $0x8] sm:$0xf]
  %v982 = vld [vmem:[%s2 + $0xc] sm:$0xf]
  %v987 = vunpack.c.l.b16 %v979
  %v988 = vunpack.c.l.b16 %v980
  %v989 = vunpack.c.l.b16 %v981
  %v990 = vunpack.c.l.b16 %v982
  %v991 = vpack.c.b16 %v988, %v987
  %v992 = vpack.c.b16 %v990, %v989
  %v996 = vsel %vm84, %v978, 0
  %998 = vmatpush.bf16.msra.mxu0 0
  %999 = vmatpush.bf16.msra.mxu0 0
  %1000 = vmatpush.bf16.msra.mxu0 0
  %1001 = vmatpush.bf16.msra.mxu0 0
  %1002 = vmatpush.bf16.msra.mxu0 0
  %1003 = vmatpush.bf16.msra.mxu0 0
  %1004 = vmatpush.bf16.msra.mxu0 %v992
  %1005 = vmatpush.bf16.msra.mxu0 %v991
  %1006 = vmatmul.bf16.gmra.mxu0 %v996
  %v1007 = vpop.f32.mrf.mxu0
  %v1008 = vadd.f32 0.0, %v1007
  %v1009 = vpop.f32.mrf.mxu0
  %1010 = vdwg.mxu0
  %v1011 = vadd.f32 %v976, %v1008
  %v1012 = vld [vmem:[#allocation3] sm:$0x3]
  %v1013 = vxor.u32 %v1011, 2147483648
  %v1014 = vmul.f32 %v1013, 1.442695
  %v1015 = vpow.pop %v1014
  %v1016 = vadd.f32 %v1015, 1.0
  %v1017 = vrcp.pop %v1016
  %v1018 = vmul.f32 %v1016, %v1017
  %v1019 = vsub.f32 1.0, %v1018
  %v1020 = vmul.f32 %v1017, %v1019
  %v1021 = vadd.f32 %v1017, %v1020
  %vm1022 = vweird.f32 %v1016
  %vm1023 = vweird.f32 %v1017
  %vm1024 = vmor %vm1022, %vm1023
  %v1025 = vsel %vm1024, %v1017, %v1021
  %v1026 = vand.u32 2147483647, %v1016
  %vm1027 = vcmp.eq.f32.partialorder %v1026, 8.507059e+37
  %v1028 = vand.u32 %v1016, 2147483648
  %v1029 = vor.u32 1.1754944e-38, %v1028
  %v1030 = vsel %vm1027, %v1029, %v1025
  %v1031 = vmul.f32 1.0, %v1030
  %v1032 = vtanh.pop %v1011
  %1034 = vrot.lane.b32.xlu0 %v1012, 32
  %v1035 = vpop.permute.xlu0 %1034
  %v1037 = vmul.f32 %v1031, %v1035
  %1039 = vrot.lane.b32.xlu0 %v1032, 64
  %v1040 = vpop.permute.xlu0 %1039
  %v1042 = vmul.f32 %v1031, %v1040
  %1044 = vrot.lane.b32.xlu0 %v1042, 32
  %v1045 = vpop.permute.xlu0 %1044
  %v1047 = vadd.f32 %v1037, %v1045
  %v1048 = vtanh.pop %v1047
  %1050 = vrot.lane.b32.xlu0 %v1048, 64
  %v1051 = vpop.permute.xlu0 %1050
  %v1053 = vmul.f32 %v1031, %v1051
  %1055 = vrot.lane.b32.xlu0 %v1053, 32
  %v1056 = vpop.permute.xlu0 %1055
  %1058 = vst.msk [vmem:[#allocation2] sm:$0x3] %vm148, %v1056
  %1060 = vrot.lane.b32.xlu0 %v1047, 96
  %v1061 = vpop.permute.xlu0 %1060
  %1063 = vst.msk [vmem:[#allocation3] sm:$0x3] %vm148, %v1061
  %s1064 = scalar_lea.vmem %s4, 10
  %1065 = vst.msk [vmem:[%s1064] sm:$0x3] %vm148, %v1056
  %s1066 = scalar_lea.vmem %s44, 4
  %v1067 = vld [vmem:[%s1066] sm:$0x3]
  %v1068 = vld [vmem:[#allocation4] sm:$0x3]
  %v1069 = vpack.c.bf16 %v1068, %v1068
  %v1070 = vld [vmem:[%s3] sm:$0xf]
  %v1071 = vld [vmem:[%s3 + $0x4] sm:$0xf]
  %v1072 = vld [vmem:[%s3 + $0x8] sm:$0xf]
  %v1073 = vld [vmem:[%s3 + $0xc] sm:$0xf]
  %v1078 = vunpack.c.l.b16 %v1070
  %v1079 = vunpack.c.l.b16 %v1071
  %v1080 = vunpack.c.l.b16 %v1072
  %v1081 = vunpack.c.l.b16 %v1073
  %v1082 = vpack.c.b16 %v1079, %v1078
  %v1083 = vpack.c.b16 %v1081, %v1080
  %v1087 = vsel %vm84, %v1069, 0
  %1089 = vmatpush.bf16.msra.mxu0 0
  %1090 = vmatpush.bf16.msra.mxu0 0
  %1091 = vmatpush.bf16.msra.mxu0 0
  %1092 = vmatpush.bf16.msra.mxu0 0
  %1093 = vmatpush.bf16.msra.mxu0 0
  %1094 = vmatpush.bf16.msra.mxu0 0
  %1095 = vmatpush.bf16.msra.mxu0 %v1083
  %1096 = vmatpush.bf16.msra.mxu0 %v1082
  %1097 = vmatmul.bf16.gmra.mxu0 %v1087
  %v1098 = vpop.f32.mrf.mxu0
  %v1099 = vadd.f32 0.0, %v1098
  %v1100 = vpop.f32.mrf.mxu0
  %1101 = vdwg.mxu0
  %v1102 = vadd.f32 %v1067, %v1099
  %v1103 = vld [vmem:[#allocation5] sm:$0x3]
  %v1104 = vxor.u32 %v1102, 2147483648
  %v1105 = vmul.f32 %v1104, 1.442695
  %v1106 = vpow.pop %v1105
  %v1107 = vadd.f32 %v1106, 1.0
  %v1108 = vrcp.pop %v1107
  %v1109 = vmul.f32 %v1107, %v1108
  %v1110 = vsub.f32 1.0, %v1109
  %v1111 = vmul.f32 %v1108, %v1110
  %v1112 = vadd.f32 %v1108, %v1111
  %vm1113 = vweird.f32 %v1107
  %vm1114 = vweird.f32 %v1108
  %vm1115 = vmor %vm1113, %vm1114
  %v1116 = vsel %vm1115, %v1108, %v1112
  %v1117 = vand.u32 2147483647, %v1107
  %vm1118 = vcmp.eq.f32.partialorder %v1117, 8.507059e+37
  %v1119 = vand.u32 %v1107, 2147483648
  %v1120 = vor.u32 1.1754944e-38, %v1119
  %v1121 = vsel %vm1118, %v1120, %v1116
  %v1122 = vmul.f32 1.0, %v1121
  %v1123 = vtanh.pop %v1102
  %1125 = vrot.lane.b32.xlu0 %v1103, 32
  %v1126 = vpop.permute.xlu0 %1125
  %v1128 = vmul.f32 %v1122, %v1126
  %1130 = vrot.lane.b32.xlu0 %v1123, 64
  %v1131 = vpop.permute.xlu0 %1130
  %v1133 = vmul.f32 %v1122, %v1131
  %1135 = vrot.lane.b32.xlu0 %v1133, 32
  %v1136 = vpop.permute.xlu0 %1135
  %v1138 = vadd.f32 %v1128, %v1136
  %v1139 = vtanh.pop %v1138
  %1141 = vrot.lane.b32.xlu0 %v1139, 64
  %v1142 = vpop.permute.xlu0 %1141
  %v1144 = vmul.f32 %v1122, %v1142
  %1146 = vrot.lane.b32.xlu0 %v1144, 32
  %v1147 = vpop.permute.xlu0 %1146
  %1149 = vst.msk [vmem:[#allocation4] sm:$0x3] %vm148, %v1147
  %1151 = vrot.lane.b32.xlu0 %v1138, 96
  %v1152 = vpop.permute.xlu0 %1151
  %1154 = vst.msk [vmem:[#allocation5] sm:$0x3] %vm148, %v1152
  %s1155 = scalar_lea.vmem %s52, 4
  %1156 = vst.msk [vmem:[%s1155] sm:$0x3] %vm148, %v1147
  %s1157 = scalar_lea.vmem %s0, 12
  %v1158 = vld [vmem:[%s1157] sm:$0x3]
  %v1159 = vld [vmem:[#allocation2] sm:$0x3]
  %v1160 = vpack.c.bf16 %v1159, %v1159
  %v1161 = vld [vmem:[%s2] sm:$0xf]
  %v1162 = vld [vmem:[%s2 + $0x4] sm:$0xf]
  %v1163 = vld [vmem:[%s2 + $0x8] sm:$0xf]
  %v1164 = vld [vmem:[%s2 + $0xc] sm:$0xf]
  %v1169 = vunpack.c.l.b16 %v1161
  %v1170 = vunpack.c.l.b16 %v1162
  %v1171 = vunpack.c.l.b16 %v1163
  %v1172 = vunpack.c.l.b16 %v1164
  %v1173 = vpack.c.b16 %v1170, %v1169
  %v1174 = vpack.c.b16 %v1172, %v1171
  %v1178 = vsel %vm84, %v1160, 0
  %1180 = vmatpush.bf16.msra.mxu0 0
  %1181 = vmatpush.bf16.msra.mxu0 0
  %1182 = vmatpush.bf16.msra.mxu0 0
  %1183 = vmatpush.bf16.msra.mxu0 0
  %1184 = vmatpush.bf16.msra.mxu0 0
  %1185 = vmatpush.bf16.msra.mxu0 0
  %1186 = vmatpush.bf16.msra.mxu0 %v1174
  %1187 = vmatpush.bf16.msra.mxu0 %v1173
  %1188 = vmatmul.bf16.gmra.mxu0 %v1178
  %v1189 = vpop.f32.mrf.mxu0
  %v1190 = vadd.f32 0.0, %v1189
  %v1191 = vpop.f32.mrf.mxu0
  %1192 = vdwg.mxu0
  %v1193 = vadd.f32 %v1158, %v1190
  %v1194 = vld [vmem:[#allocation3] sm:$0x3]
  %v1195 = vxor.u32 %v1193, 2147483648
  %v1196 = vmul.f32 %v1195, 1.442695
  %v1197 = vpow.pop %v1196
  %v1198 = vadd.f32 %v1197, 1.0
  %v1199 = vrcp.pop %v1198
  %v1200 = vmul.f32 %v1198, %v1199
  %v1201 = vsub.f32 1.0, %v1200
  %v1202 = vmul.f32 %v1199, %v1201
  %v1203 = vadd.f32 %v1199, %v1202
  %vm1204 = vweird.f32 %v1198
  %vm1205 = vweird.f32 %v1199
  %vm1206 = vmor %vm1204, %vm1205
  %v1207 = vsel %vm1206, %v1199, %v1203
  %v1208 = vand.u32 2147483647, %v1198
  %vm1209 = vcmp.eq.f32.partialorder %v1208, 8.507059e+37
  %v1210 = vand.u32 %v1198, 2147483648
  %v1211 = vor.u32 1.1754944e-38, %v1210
  %v1212 = vsel %vm1209, %v1211, %v1207
  %v1213 = vmul.f32 1.0, %v1212
  %v1214 = vtanh.pop %v1193
  %1216 = vrot.lane.b32.xlu0 %v1194, 32
  %v1217 = vpop.permute.xlu0 %1216
  %v1219 = vmul.f32 %v1213, %v1217
  %1221 = vrot.lane.b32.xlu0 %v1214, 64
  %v1222 = vpop.permute.xlu0 %1221
  %v1224 = vmul.f32 %v1213, %v1222
  %1226 = vrot.lane.b32.xlu0 %v1224, 32
  %v1227 = vpop.permute.xlu0 %1226
  %v1229 = vadd.f32 %v1219, %v1227
  %v1230 = vtanh.pop %v1229
  %1232 = vrot.lane.b32.xlu0 %v1230, 64
  %v1233 = vpop.permute.xlu0 %1232
  %v1235 = vmul.f32 %v1213, %v1233
  %1237 = vrot.lane.b32.xlu0 %v1235, 32
  %v1238 = vpop.permute.xlu0 %1237
  %1240 = vst.msk [vmem:[#allocation2] sm:$0x3] %vm148, %v1238
  %1242 = vrot.lane.b32.xlu0 %v1229, 96
  %v1243 = vpop.permute.xlu0 %1242
  %1245 = vst.msk [vmem:[#allocation3] sm:$0x3] %vm148, %v1243
  %s1246 = scalar_lea.vmem %s4, 12
  %1247 = vst.msk [vmem:[%s1246] sm:$0x3] %vm148, %v1238
  %s1248 = scalar_lea.vmem %s44, 2
  %v1249 = vld [vmem:[%s1248] sm:$0x3]
  %v1250 = vld [vmem:[#allocation4] sm:$0x3]
  %v1251 = vpack.c.bf16 %v1250, %v1250
  %v1252 = vld [vmem:[%s3] sm:$0xf]
  %v1253 = vld [vmem:[%s3 + $0x4] sm:$0xf]
  %v1254 = vld [vmem:[%s3 + $0x8] sm:$0xf]
  %v1255 = vld [vmem:[%s3 + $0xc] sm:$0xf]
  %v1260 = vunpack.c.l.b16 %v1252
  %v1261 = vunpack.c.l.b16 %v1253
  %v1262 = vunpack.c.l.b16 %v1254
  %v1263 = vunpack.c.l.b16 %v1255
  %v1264 = vpack.c.b16 %v1261, %v1260
  %v1265 = vpack.c.b16 %v1263, %v1262
  %v1269 = vsel %vm84, %v1251, 0
  %1271 = vmatpush.bf16.msra.mxu0 0
  %1272 = vmatpush.bf16.msra.mxu0 0
  %1273 = vmatpush.bf16.msra.mxu0 0
  %1274 = vmatpush.bf16.msra.mxu0 0
  %1275 = vmatpush.bf16.msra.mxu0 0
  %1276 = vmatpush.bf16.msra.mxu0 0
  %1277 = vmatpush.bf16.msra.mxu0 %v1265
  %1278 = vmatpush.bf16.msra.mxu0 %v1264
  %1279 = vmatmul.bf16.gmra.mxu0 %v1269
  %v1280 = vpop.f32.mrf.mxu0
  %v1281 = vadd.f32 0.0, %v1280
  %v1282 = vpop.f32.mrf.mxu0
  %1283 = vdwg.mxu0
  %v1284 = vadd.f32 %v1249, %v1281
  %v1285 = vld [vmem:[#allocation5] sm:$0x3]
  %v1286 = vxor.u32 %v1284, 2147483648
  %v1287 = vmul.f32 %v1286, 1.442695
  %v1288 = vpow.pop %v1287
  %v1289 = vadd.f32 %v1288, 1.0
  %v1290 = vrcp.pop %v1289
  %v1291 = vmul.f32 %v1289, %v1290
  %v1292 = vsub.f32 1.0, %v1291
  %v1293 = vmul.f32 %v1290, %v1292
  %v1294 = vadd.f32 %v1290, %v1293
  %vm1295 = vweird.f32 %v1289
  %vm1296 = vweird.f32 %v1290
  %vm1297 = vmor %vm1295, %vm1296
  %v1298 = vsel %vm1297, %v1290, %v1294
  %v1299 = vand.u32 2147483647, %v1289
  %vm1300 = vcmp.eq.f32.partialorder %v1299, 8.507059e+37
  %v1301 = vand.u32 %v1289, 2147483648
  %v1302 = vor.u32 1.1754944e-38, %v1301
  %v1303 = vsel %vm1300, %v1302, %v1298
  %v1304 = vmul.f32 1.0, %v1303
  %v1305 = vtanh.pop %v1284
  %1307 = vrot.lane.b32.xlu0 %v1285, 32
  %v1308 = vpop.permute.xlu0 %1307
  %v1310 = vmul.f32 %v1304, %v1308
  %1312 = vrot.lane.b32.xlu0 %v1305, 64
  %v1313 = vpop.permute.xlu0 %1312
  %v1315 = vmul.f32 %v1304, %v1313
  %1317 = vrot.lane.b32.xlu0 %v1315, 32
  %v1318 = vpop.permute.xlu0 %1317
  %v1320 = vadd.f32 %v1310, %v1318
  %v1321 = vtanh.pop %v1320
  %1323 = vrot.lane.b32.xlu0 %v1321, 64
  %v1324 = vpop.permute.xlu0 %1323
  %v1326 = vmul.f32 %v1304, %v1324
  %1328 = vrot.lane.b32.xlu0 %v1326, 32
  %v1329 = vpop.permute.xlu0 %1328
  %1331 = vst.msk [vmem:[#allocation4] sm:$0x3] %vm148, %v1329
  %1333 = vrot.lane.b32.xlu0 %v1320, 96
  %v1334 = vpop.permute.xlu0 %1333
  %1336 = vst.msk [vmem:[#allocation5] sm:$0x3] %vm148, %v1334
  %s1337 = scalar_lea.vmem %s52, 2
  %1338 = vst.msk [vmem:[%s1337] sm:$0x3] %vm148, %v1329
  %s1339 = scalar_lea.vmem %s0, 14
  %v1340 = vld [vmem:[%s1339] sm:$0x3]
  %v1341 = vld [vmem:[#allocation2] sm:$0x3]
  %v1342 = vpack.c.bf16 %v1341, %v1341
  %v1343 = vld [vmem:[%s2] sm:$0xf]
  %v1344 = vld [vmem:[%s2 + $0x4] sm:$0xf]
  %v1345 = vld [vmem:[%s2 + $0x8] sm:$0xf]
  %v1346 = vld [vmem:[%s2 + $0xc] sm:$0xf]
  %v1351 = vunpack.c.l.b16 %v1343
  %v1352 = vunpack.c.l.b16 %v1344
  %v1353 = vunpack.c.l.b16 %v1345
  %v1354 = vunpack.c.l.b16 %v1346
  %v1355 = vpack.c.b16 %v1352, %v1351
  %v1356 = vpack.c.b16 %v1354, %v1353
  %v1360 = vsel %vm84, %v1342, 0
  %1362 = vmatpush.bf16.msra.mxu0 0
  %1363 = vmatpush.bf16.msra.mxu0 0
  %1364 = vmatpush.bf16.msra.mxu0 0
  %1365 = vmatpush.bf16.msra.mxu0 0
  %1366 = vmatpush.bf16.msra.mxu0 0
  %1367 = vmatpush.bf16.msra.mxu0 0
  %1368 = vmatpush.bf16.msra.mxu0 %v1356
  %1369 = vmatpush.bf16.msra.mxu0 %v1355
  %1370 = vmatmul.bf16.gmra.mxu0 %v1360
  %v1371 = vpop.f32.mrf.mxu0
  %v1372 = vadd.f32 0.0, %v1371
  %v1373 = vpop.f32.mrf.mxu0
  %1374 = vdwg.mxu0
  %v1375 = vadd.f32 %v1340, %v1372
  %v1376 = vld [vmem:[#allocation3] sm:$0x3]
  %v1377 = vxor.u32 %v1375, 2147483648
  %v1378 = vmul.f32 %v1377, 1.442695
  %v1379 = vpow.pop %v1378
  %v1380 = vadd.f32 %v1379, 1.0
  %v1381 = vrcp.pop %v1380
  %v1382 = vmul.f32 %v1380, %v1381
  %v1383 = vsub.f32 1.0, %v1382
  %v1384 = vmul.f32 %v1381, %v1383
  %v1385 = vadd.f32 %v1381, %v1384
  %vm1386 = vweird.f32 %v1380
  %vm1387 = vweird.f32 %v1381
  %vm1388 = vmor %vm1386, %vm1387
  %v1389 = vsel %vm1388, %v1381, %v1385
  %v1390 = vand.u32 2147483647, %v1380
  %vm1391 = vcmp.eq.f32.partialorder %v1390, 8.507059e+37
  %v1392 = vand.u32 %v1380, 2147483648
  %v1393 = vor.u32 1.1754944e-38, %v1392
  %v1394 = vsel %vm1391, %v1393, %v1389
  %v1395 = vmul.f32 1.0, %v1394
  %v1396 = vtanh.pop %v1375
  %1398 = vrot.lane.b32.xlu0 %v1376, 32
  %v1399 = vpop.permute.xlu0 %1398
  %v1401 = vmul.f32 %v1395, %v1399
  %1403 = vrot.lane.b32.xlu0 %v1396, 64
  %v1404 = vpop.permute.xlu0 %1403
  %v1406 = vmul.f32 %v1395, %v1404
  %1408 = vrot.lane.b32.xlu0 %v1406, 32
  %v1409 = vpop.permute.xlu0 %1408
  %v1411 = vadd.f32 %v1401, %v1409
  %v1412 = vtanh.pop %v1411
  %1414 = vrot.lane.b32.xlu0 %v1412, 64
  %v1415 = vpop.permute.xlu0 %1414
  %v1417 = vmul.f32 %v1395, %v1415
  %1419 = vrot.lane.b32.xlu0 %v1417, 32
  %v1420 = vpop.permute.xlu0 %1419
  %1422 = vst.msk [vmem:[#allocation2] sm:$0x3] %vm148, %v1420
  %1424 = vrot.lane.b32.xlu0 %v1411, 96
  %v1425 = vpop.permute.xlu0 %1424
  %1427 = vst.msk [vmem:[#allocation3] sm:$0x3] %vm148, %v1425
  %s1428 = scalar_lea.vmem %s4, 14
  %1429 = vst.msk [vmem:[%s1428] sm:$0x3] %vm148, %v1420
  %v1430 = vld [vmem:[%s44] sm:$0x3]
  %v1431 = vld [vmem:[#allocation4] sm:$0x3]
  %v1432 = vpack.c.bf16 %v1431, %v1431
  %v1433 = vld [vmem:[%s3] sm:$0xf]
  %v1434 = vld [vmem:[%s3 + $0x4] sm:$0xf]
  %v1435 = vld [vmem:[%s3 + $0x8] sm:$0xf]
  %v1436 = vld [vmem:[%s3 + $0xc] sm:$0xf]
  %v1441 = vunpack.c.l.b16 %v1433
  %v1442 = vunpack.c.l.b16 %v1434
  %v1443 = vunpack.c.l.b16 %v1435
  %v1444 = vunpack.c.l.b16 %v1436
  %v1445 = vpack.c.b16 %v1442, %v1441
  %v1446 = vpack.c.b16 %v1444, %v1443
  %v1450 = vsel %vm84, %v1432, 0
  %1452 = vmatpush.bf16.msra.mxu0 0
  %1453 = vmatpush.bf16.msra.mxu0 0
  %1454 = vmatpush.bf16.msra.mxu0 0
  %1455 = vmatpush.bf16.msra.mxu0 0
  %1456 = vmatpush.bf16.msra.mxu0 0
  %1457 = vmatpush.bf16.msra.mxu0 0
  %1458 = vmatpush.bf16.msra.mxu0 %v1446
  %1459 = vmatpush.bf16.msra.mxu0 %v1445
  %1460 = vmatmul.bf16.gmra.mxu0 %v1450
  %v1461 = vpop.f32.mrf.mxu0
  %v1462 = vadd.f32 0.0, %v1461
  %v1463 = vpop.f32.mrf.mxu0
  %1464 = vdwg.mxu0
  %v1465 = vadd.f32 %v1430, %v1462
  %v1466 = vld [vmem:[#allocation5] sm:$0x3]
  %v1467 = vxor.u32 %v1465, 2147483648
  %v1468 = vmul.f32 %v1467, 1.442695
  %v1469 = vpow.pop %v1468
  %v1470 = vadd.f32 %v1469, 1.0
  %v1471 = vrcp.pop %v1470
  %v1472 = vmul.f32 %v1470, %v1471
  %v1473 = vsub.f32 1.0, %v1472
  %v1474 = vmul.f32 %v1471, %v1473
  %v1475 = vadd.f32 %v1471, %v1474
  %vm1476 = vweird.f32 %v1470
  %vm1477 = vweird.f32 %v1471
  %vm1478 = vmor %vm1476, %vm1477
  %v1479 = vsel %vm1478, %v1471, %v1475
  %v1480 = vand.u32 2147483647, %v1470
  %vm1481 = vcmp.eq.f32.partialorder %v1480, 8.507059e+37
  %v1482 = vand.u32 %v1470, 2147483648
  %v1483 = vor.u32 1.1754944e-38, %v1482
  %v1484 = vsel %vm1481, %v1483, %v1479
  %v1485 = vmul.f32 1.0, %v1484
  %v1486 = vtanh.pop %v1465
  %1488 = vrot.lane.b32.xlu0 %v1466, 32
  %v1489 = vpop.permute.xlu0 %1488
  %v1491 = vmul.f32 %v1485, %v1489
  %1493 = vrot.lane.b32.xlu0 %v1486, 64
  %v1494 = vpop.permute.xlu0 %1493
  %v1496 = vmul.f32 %v1485, %v1494
  %1498 = vrot.lane.b32.xlu0 %v1496, 32
  %v1499 = vpop.permute.xlu0 %1498
  %v1501 = vadd.f32 %v1491, %v1499
  %v1502 = vtanh.pop %v1501
  %1504 = vrot.lane.b32.xlu0 %v1502, 64
  %v1505 = vpop.permute.xlu0 %1504
  %v1507 = vmul.f32 %v1485, %v1505
  %1509 = vrot.lane.b32.xlu0 %v1507, 32
  %v1510 = vpop.permute.xlu0 %1509
  %1512 = vst.msk [vmem:[#allocation4] sm:$0x3] %vm148, %v1510
  %1514 = vrot.lane.b32.xlu0 %v1501, 96
  %v1515 = vpop.permute.xlu0 %1514
  %1517 = vst.msk [vmem:[#allocation5] sm:$0x3] %vm148, %v1515
  %1518 = vst.msk [vmem:[%s52] sm:$0x3] %vm148, %v1510
  %s1519 = ssub.s32 0, 0
  %s1520 = smul.u32 8, %s1519
  %p1521 = scmp.lt.s32.totalorder %s1520, 7
  %s1522 = scalar_select %p1521, %s1520, 7
  %s1523 = smul.addr %s1522, 2
  %s1524 = scalar_lea.vmem %s5, %s1523
  // Predicated region
  $region22: #{multi_level_rnn_encoder.2} parent=0 // pred_check
    _
  $region23: #{multi_level_rnn_encoder.2} parent=0 // pred_check_branch
    %1526 = sbr.rel (0) target = $region25
  $region24: #{multi_level_rnn_encoder.2} parent=0 // pred_region
    _
  $region25: #{multi_level_rnn_encoder.2} parent=0 // pred_fallthru
    _
  // Predicated region
  $region26: #{multi_level_rnn_encoder.2} parent=0 // pred_check
    _
  $region27: #{multi_level_rnn_encoder.2} parent=0 // pred_check_branch
    %1528 = sbr.rel (0) target = $region29
  $region28: #{multi_level_rnn_encoder.2} parent=0 // pred_region
    %s1529 = ssub.s32 0, 0
    %s1530 = smul.u32 8, %s1529
  $region29: #{multi_level_rnn_encoder.2} parent=0 // pred_fallthru
    _
  // Predicated region
  $region30: #{multi_level_rnn_encoder.2} parent=0 // pred_check
    _
  $region31: #{multi_level_rnn_encoder.2} parent=0 // pred_check_branch
    %1532 = sbr.rel (0) target = $region33
  $region32: #{multi_level_rnn_encoder.2} parent=0 // pred_region
    _
  $region33: #{multi_level_rnn_encoder.2} parent=0 // pred_fallthru
    _
  // Predicated region
  $region34: #{multi_level_rnn_encoder.2} parent=0 // pred_check
    _
  $region35: #{multi_level_rnn_encoder.2} parent=0 // pred_check_branch
    %1534 = sbr.rel (0) target = $region37
  $region36: #{multi_level_rnn_encoder.2} parent=0 // pred_region
    %s1535 = ssub.s32 0, 0
    %s1536 = smul.u32 8, %s1535
    %p1537 = scmp.lt.s32.totalorder %s1536, 7
    %s1538 = scalar_select %p1537, %s1536, 7
    %s1539 = smul.addr %s1538, 2
    %s1540 = scalar_lea.vmem %s5, %s1539
  $region37: #{multi_level_rnn_encoder.2} parent=0 // pred_fallthru
    _

</llo_original>
